<compile_context>
chip_gen: v5e
topology: v5e:2x2
jax: 0.10.0
libtpu: 0.0.40
codegen_flags: <defaults>
</compile_context>

<pallas_src>
import jax
import jax.numpy as jnp
from jax.experimental import pallas as pl
from jax.experimental.pallas import tpu as pltpu


# Below this many elements, per-step + custom-call launch overhead dominates
# and the Pallas call only blocks XLA fusion — use plain JAX instead.
_SMALL_N_BYPASS = 1 << 18  # 256K elements


def _lossd_kernel(r_x_ref, r_x_hat_ref, o_ref):
    # out = 1 + r_x_hat + (1 - r_x)  ==  2 + (r_x_hat - r_x)
    # Read at native dtype; VPU casts are free for a memory-bound kernel.
    a = r_x_hat_ref[...].astype(jnp.float32)
    b = r_x_ref[...].astype(jnp.float32)
    o_ref[...] = (2.0 + (a - b)).astype(o_ref.dtype)


def _run_2d(rx2: jax.Array, rxh2: jax.Array, out_dtype) -> jax.Array:
    """Run the elementwise kernel on a lane-dense 2-D slab (rows, lane)."""
    rows, lane = rx2.shape
    itemsizes = (
        jnp.dtype(rx2.dtype).itemsize,
        jnp.dtype(rxh2.dtype).itemsize,
        jnp.dtype(out_dtype).itemsize,
    )
    max_item = max(itemsizes)

    # ~4 MiB per stream block: 3 streams x 2 buffers x 4 MiB ~= 24 MiB of
    # VMEM — amortizes the ~0.35 us/step cost, stays under the 32 MiB limit
    # below and well inside v7x's 64 MiB physical VMEM.
    target_bytes = 4 * 1024 * 1024
    br = max(1, target_bytes // (lane * max_item))
    if br >= rows:
        block_rows = rows  # single block along rows (full-dim exemption)
    else:
        # Multiple of 64 sublanes satisfies the (8,128) tiling rule for every
        # packed dtype (f32/bf16/i8/fp8).
        block_rows = max(64, (br // 64) * 64)

    grid = (pl.cdiv(rows, block_rows),)
    n = rows * lane
    cost = pl.CostEstimate(
        flops=2 * n,
        transcendentals=0,
        bytes_accessed=n * sum(itemsizes),
    )

    return pl.pallas_call(
        _lossd_kernel,
        out_shape=jax.ShapeDtypeStruct((rows, lane), out_dtype),
        grid=grid,
        in_specs=[
            pl.BlockSpec((block_rows, lane), lambda i: (i, 0)),
            pl.BlockSpec((block_rows, lane), lambda i: (i, 0)),
        ],
        out_specs=pl.BlockSpec((block_rows, lane), lambda i: (i, 0)),
        compiler_params=pltpu.CompilerParams(
            dimension_semantics=("parallel",),
            # Explicit limit: v5e default scoped VMEM is only 16 MiB; 32 MiB
            # keeps the 24 MiB double-buffered footprint safe on v5e/v6e/v7x.
            vmem_limit_bytes=32 * 1024 * 1024,
        ),
        cost_estimate=cost,
    )(rx2, rxh2)


def loss_d(r_x: jax.Array, r_x_hat: jax.Array) -> jax.Array:
    """Pallas implementation of LossD.forward.

    r_x, r_x_hat: identically-shaped arrays (NCHW or any shape).
    Returns an array of the same shape: 1 + r_x_hat + (1 - r_x).
    """
    assert r_x.shape == r_x_hat.shape, "LossD expects same-shaped inputs"
    orig_shape = r_x.shape
    n = r_x.size
    out_dtype = jnp.result_type(r_x.dtype, r_x_hat.dtype)

    both_float = jnp.issubdtype(r_x.dtype, jnp.floating) and jnp.issubdtype(
        r_x_hat.dtype, jnp.floating
    )

    # Widest lane width that divides the element count -> copy-free reshape
    # to a lane-dense 2-D slab.
    lane = None
    for w in (2048, 1024, 512, 256, 128):
        if n >= w and n % w == 0:
            lane = w
            break

    if (not both_float) or lane is None or n < _SMALL_N_BYPASS:
        # Ragged (common PatchGAN shapes), integer-dtype, or tiny inputs:
        # one fused XLA elementwise op is already at roofline — no padding,
        # no extra HBM passes, no launch overhead.
        out = 2 + (r_x_hat - r_x)
        return out.astype(out_dtype).reshape(orig_shape)

    rows = n // lane
    out2 = _run_2d(r_x.reshape(rows, lane), r_x_hat.reshape(rows, lane), out_dtype)
    return out2.reshape(orig_shape)


if __name__ == "__main__":
    key = jax.random.PRNGKey(0)
    k1, k2, k3, k4 = jax.random.split(key, 4)

    # 1) Small discriminator-output-like shape (NCHW) -> fused-JAX bypass path.
    x_shape = (2, 4, 16, 16)
    r_x = jax.random.normal(k1, x_shape, dtype=jnp.float32)
    r_x_hat = jax.random.normal(k2, x_shape, dtype=jnp.float32)
    out = jax.block_until_ready(loss_d(r_x, r_x_hat))
    ref = 1.0 + r_x_hat + (1.0 - r_x)
    assert out.shape == ref.shape and out.dtype == ref.dtype
    assert jnp.allclose(out, ref, atol=1e-6), "mismatch (small bypass path)"

    # 2) Ragged PatchGAN-style shape (30x30 map, not a multiple of 128).
    p_shape = (3, 1, 30, 30)
    p_x = jax.random.normal(k3, p_shape, dtype=jnp.float32)
    p_xh = jax.random.normal(k4, p_shape, dtype=jnp.float32)
    out_p = jax.block_until_ready(loss_d(p_x, p_xh))
    ref_p = 1.0 + p_xh + (1.0 - p_x)
    assert jnp.allclose(out_p, ref_p, atol=1e-6), "mismatch (ragged path)"

    # 3) Larger 128-aligned shape -> exercises the Pallas streaming kernel.
    b_shape = (2, 8, 160, 160)  # 409,600 elements, lane=2048 copy-free view
    b_x = jax.random.normal(k1, b_shape, dtype=jnp.float32)
    b_xh = jax.random.normal(k2, b_shape, dtype=jnp.float32)
    out_b = jax.block_until_ready(loss_d(b_x, b_xh))
    ref_b = 1.0 + b_xh + (1.0 - b_x)
    assert out_b.shape == ref_b.shape and out_b.dtype == ref_b.dtype
    assert jnp.allclose(out_b, ref_b, atol=1e-5), "mismatch (Pallas path)"

    # 4) Mixed dtype (bf16 / f32) through the Pallas path: in-kernel cast,
    #    no wrapper-side astype / extra HBM pass.
    m_x = b_x.astype(jnp.bfloat16)
    out_m = jax.block_until_ready(loss_d(m_x, b_xh))
    ref_m = 1.0 + b_xh + (1.0 - m_x.astype(jnp.float32))
    assert out_m.dtype == jnp.float32
    assert jnp.allclose(out_m, ref_m, atol=1e-5), "mismatch (mixed-dtype path)"

    print("KERNEL_OK")
</pallas_src>

<mosaic_0001>
module attributes {stable_mosaic.version = 11 : i64} {
  func.func @_lossd_kernel(%arg0: i32, %arg1: memref<200x2048xf32, #tpu.memory_space<vmem>>, %arg2: memref<200x2048xf32, #tpu.memory_space<vmem>>, %arg3: memref<200x2048xf32, #tpu.memory_space<vmem>>) attributes {dimension_semantics = [#tpu.dimension_semantics<parallel>], iteration_bounds = array<i64: 1>, scalar_prefetch = 0 : i64, scratch_operands = 0 : i64, tpu.core_type = #tpu.core_type<tc>, window_params = [{transform_indices = @transform_0, window_bounds = array<i64: 200, 2048>}, {transform_indices = @transform_1, window_bounds = array<i64: 200, 2048>}, {transform_indices = @transform_2, window_bounds = array<i64: 200, 2048>}]} {
    %c0 = arith.constant 0 : index
    %c0_0 = arith.constant 0 : index
    %0 = vector.load %arg2[%c0, %c0_0] : memref<200x2048xf32, #tpu.memory_space<vmem>>, vector<200x2048xf32>
    %c0_1 = arith.constant 0 : index
    %c0_2 = arith.constant 0 : index
    %1 = vector.load %arg1[%c0_1, %c0_2] : memref<200x2048xf32, #tpu.memory_space<vmem>>, vector<200x2048xf32>
    %2 = arith.subf %0, %1 : vector<200x2048xf32>
    %cst = arith.constant 2.000000e+00 : f32
    %3 = vector.broadcast %cst : f32 to vector<200x2048xf32>
    %4 = arith.addf %3, %2 : vector<200x2048xf32>
    %c0_3 = arith.constant 0 : index
    %c0_4 = arith.constant 0 : index
    %5 = vector.load %arg3[%c0_3, %c0_4] : memref<200x2048xf32, #tpu.memory_space<vmem>>, vector<200x2048xf32>
    tpu.vector_store %arg3[%c0_3, %c0_4], %4 {strides = array<i32>} : memref<200x2048xf32, #tpu.memory_space<vmem>>, vector<200x2048xf32>,
    return
  }
  func.func @transform_0(%arg0: i32) -> (i32, i32) {
    %c0_i32 = arith.constant 0 : i32
    %c0_i32_0 = arith.constant 0 : i32
    return %arg0, %c0_i32 : i32, i32
  }
  func.func @transform_1(%arg0: i32) -> (i32, i32) {
    %c0_i32 = arith.constant 0 : i32
    %c0_i32_0 = arith.constant 0 : i32
    return %arg0, %c0_i32 : i32, i32
  }
  func.func @transform_2(%arg0: i32) -> (i32, i32) {
    %c0_i32 = arith.constant 0 : i32
    %c0_i32_0 = arith.constant 0 : i32
    return %arg0, %c0_i32 : i32, i32
  }
}

</mosaic_0001>

<llo_original>
// kernel: tpu_custom_call.1
$region0: #{tpu_custom_call.1}
  #allocation0 [shape = 'u32[]', space=smem, size = 0x4, offset = 0x4, fixed_abs, tag = 'smem constant byte address 0x4 - core index']
  #allocation1 [shape = 'u32[72,128]{1,0:T(1,128)}', space=vmem, size = 0x9000, scoped, tag = 'internal scratch']
  %s0 = inlined_call_operand.hbm [shape: f32[200,2048], index: 0, kind: input, shape index: {}]
  %s1 = inlined_call_operand.hbm [shape: f32[200,2048], index: 1, kind: input, shape index: {}]
  %s2 = inlined_call_operand.hbm [shape: f32[200,2048], index: 2, kind: output, shape index: {}]
  %s3 = sld [smem:[#allocation0]]
  $region26: #{tpu_custom_call.1} parent=0
    _
  %s5 = ssub.s32 1, %s3
  %s6 = scalar_select 0, %s5, %s3
  $region1: #{tpu_custom_call.1} parent=0
    #allocation2 [shape = 'u8[1638400]{0}', space=vmem, size = 0x190000, scoped, tag = 'input window, operand 0, single buffered']
    #allocation3 [shape = 's32[1]{0}', space=sflag, size = 0x4, scoped, tag = 'scoped memory for tpu_custom_call.1']
    #allocation4 [shape = 's32[1]{0}', space=sflag, size = 0x4, scoped, tag = 'scoped memory for tpu_custom_call.1']
    #allocation5 [shape = 'u8[1638400]{0}', space=vmem, size = 0x190000, scoped, tag = 'input window, operand 1, single buffered']
    #allocation6 [shape = 's32[1]{0}', space=sflag, size = 0x4, scoped, tag = 'scoped memory for tpu_custom_call.1']
    #allocation7 [shape = 'u8[1638400]{0}', space=vmem, size = 0x190000, scoped, tag = 'output window, operand 0, single buffered']
    %7 = vsyncpa [#allocation3], 0
    %8 = vsyncpa [#allocation6], 0
    %9 = vsyncpa [#allocation4], 0
    // Predicated region
    $region2: #{tpu_custom_call.1} parent=1 // pred_check
      _
    $region3: #{tpu_custom_call.1} parent=1 // pred_check_branch
      %11 = sbr.rel (0) target = $region5
    $region4: #{tpu_custom_call.1} parent=1 // pred_region
      %13 = vsyncadd [#allocation3], 0
      %s14 = sshll.u32 %s0, 4
      %s15 = int_to_ptr.hbm [resolvable:$true] %s14
      %s16 = sshll.u32 [#allocation2], 4
      %s17 = int_to_ptr.vmem [resolvable:$true] %s16
      %22 = dma.hbm_to_vmem [thread:$0]  %s15, 51200, %s17, [#allocation3], 2048, 2048, 128
    $region5: #{tpu_custom_call.1} parent=1 // pred_fallthru
      _
    // Predicated region
    $region6: #{tpu_custom_call.1} parent=1 // pred_check
      _
    $region7: #{tpu_custom_call.1} parent=1 // pred_check_branch
      %24 = sbr.rel (0) target = $region9
    $region8: #{tpu_custom_call.1} parent=1 // pred_region
      %26 = vsyncadd [#allocation6], 0
      %s27 = sshll.u32 %s1, 4
      %s28 = int_to_ptr.hbm [resolvable:$true] %s27
      %s29 = sshll.u32 [#allocation5], 4
      %s30 = int_to_ptr.vmem [resolvable:$true] %s29
      %35 = dma.hbm_to_vmem [thread:$0]  %s28, 51200, %s30, [#allocation6], 2048, 2048, 128
    $region9: #{tpu_custom_call.1} parent=1 // pred_fallthru
      _
    // Predicated region
    $region10: #{tpu_custom_call.1} parent=1 // pred_check
      _
    $region11: #{tpu_custom_call.1} parent=1 // pred_check_branch
      %37 = sbr.rel (0) target = $region13
    $region12: #{tpu_custom_call.1} parent=1 // pred_region
      %39 = dma.done [#allocation3], 51200
    $region13: #{tpu_custom_call.1} parent=1 // pred_fallthru
      _
    // Predicated region
    $region14: #{tpu_custom_call.1} parent=1 // pred_check
      _
    $region15: #{tpu_custom_call.1} parent=1 // pred_check_branch
      %41 = sbr.rel (0) target = $region17
    $region16: #{tpu_custom_call.1} parent=1 // pred_region
      %43 = dma.done [#allocation6], 51200
    $region17: #{tpu_custom_call.1} parent=1 // pred_fallthru
      _
    %v44 = vld [vmem:[#allocation5] sm:$0xff]
    %v45 = vld [vmem:[#allocation5 + $0x8] sm:$0xff]
    %v46 = vld [vmem:[#allocation5 + $0x10] sm:$0xff]
    %v47 = vld [vmem:[#allocation5 + $0x18] sm:$0xff]
    %v48 = vld [vmem:[#allocation5 + $0x20] sm:$0xff]
    %v49 = vld [vmem:[#allocation5 + $0x28] sm:$0xff]
    %v50 = vld [vmem:[#allocation5 + $0x30] sm:$0xff]
    %v51 = vld [vmem:[#allocation5 + $0x38] sm:$0xff]
    %v52 = vld [vmem:[#allocation5 + $0x40] sm:$0xff]
    %v53 = vld [vmem:[#allocation5 + $0x48] sm:$0xff]
    %v54 = vld [vmem:[#allocation5 + $0x50] sm:$0xff]
    %v55 = vld [vmem:[#allocation5 + $0x58] sm:$0xff]
    %v56 = vld [vmem:[#allocation5 + $0x60] sm:$0xff]
    %v57 = vld [vmem:[#allocation5 + $0x68] sm:$0xff]
    %v58 = vld [vmem:[#allocation5 + $0x70] sm:$0xff]
    %v59 = vld [vmem:[#allocation5 + $0x78] sm:$0xff]
    %v60 = vld [vmem:[#allocation5 + $0x80] sm:$0xff]
    %v61 = vld [vmem:[#allocation5 + $0x88] sm:$0xff]
    %v62 = vld [vmem:[#allocation5 + $0x90] sm:$0xff]
    %v63 = vld [vmem:[#allocation5 + $0x98] sm:$0xff]
    %v64 = vld [vmem:[#allocation5 + $0xa0] sm:$0xff]
    %v65 = vld [vmem:[#allocation5 + $0xa8] sm:$0xff]
    %v66 = vld [vmem:[#allocation5 + $0xb0] sm:$0xff]
    %v67 = vld [vmem:[#allocation5 + $0xb8] sm:$0xff]
    %v68 = vld [vmem:[#allocation5 + $0xc0] sm:$0xff]
    %v69 = vld [vmem:[#allocation5 + $0xc8] sm:$0xff]
    %v70 = vld [vmem:[#allocation5 + $0xd0] sm:$0xff]
    %v71 = vld [vmem:[#allocation5 + $0xd8] sm:$0xff]
    %v72 = vld [vmem:[#allocation5 + $0xe0] sm:$0xff]
    %v73 = vld [vmem:[#allocation5 + $0xe8] sm:$0xff]
    %v74 = vld [vmem:[#allocation5 + $0xf0] sm:$0xff]
    %v75 = vld [vmem:[#allocation5 + $0xf8] sm:$0xff]
    %v76 = vld [vmem:[#allocation5 + $0x100] sm:$0xff]
    %v77 = vld [vmem:[#allocation5 + $0x108] sm:$0xff]
    %v78 = vld [vmem:[#allocation5 + $0x110] sm:$0xff]
    %v79 = vld [vmem:[#allocation5 + $0x118] sm:$0xff]
    %v80 = vld [vmem:[#allocation5 + $0x120] sm:$0xff]
    %v81 = vld [vmem:[#allocation5 + $0x128] sm:$0xff]
    %v82 = vld [vmem:[#allocation5 + $0x130] sm:$0xff]
    %v83 = vld [vmem:[#allocation5 + $0x138] sm:$0xff]
    %v84 = vld [vmem:[#allocation5 + $0x140] sm:$0xff]
    %v85 = vld [vmem:[#allocation5 + $0x148] sm:$0xff]
    %v86 = vld [vmem:[#allocation5 + $0x150] sm:$0xff]
    %v87 = vld [vmem:[#allocation5 + $0x158] sm:$0xff]
    %v88 = vld [vmem:[#allocation5 + $0x160] sm:$0xff]
    %v89 = vld [vmem:[#allocation5 + $0x168] sm:$0xff]
    %v90 = vld [vmem:[#allocation5 + $0x170] sm:$0xff]
    %v91 = vld [vmem:[#allocation5 + $0x178] sm:$0xff]
    %v92 = vld [vmem:[#allocation5 + $0x180] sm:$0xff]
    %v93 = vld [vmem:[#allocation5 + $0x188] sm:$0xff]
    %v94 = vld [vmem:[#allocation5 + $0x190] sm:$0xff]
    %v95 = vld [vmem:[#allocation5 + $0x198] sm:$0xff]
    %v96 = vld [vmem:[#allocation5 + $0x1a0] sm:$0xff]
    %v97 = vld [vmem:[#allocation5 + $0x1a8] sm:$0xff]
    %v98 = vld [vmem:[#allocation5 + $0x1b0] sm:$0xff]
    %v99 = vld [vmem:[#allocation5 + $0x1b8] sm:$0xff]
    %v100 = vld [vmem:[#allocation5 + $0x1c0] sm:$0xff]
    %v101 = vld [vmem:[#allocation5 + $0x1c8] sm:$0xff]
    %v102 = vld [vmem:[#allocation5 + $0x1d0] sm:$0xff]
    %v103 = vld [vmem:[#allocation5 + $0x1d8] sm:$0xff]
    %v104 = vld [vmem:[#allocation5 + $0x1e0] sm:$0xff]
    %v105 = vld [vmem:[#allocation5 + $0x1e8] sm:$0xff]
    %v106 = vld [vmem:[#allocation5 + $0x1f0] sm:$0xff]
    %v107 = vld [vmem:[#allocation5 + $0x1f8] sm:$0xff]
    %v108 = vld [vmem:[#allocation5 + $0x200] sm:$0xff]
    %v109 = vld [vmem:[#allocation5 + $0x208] sm:$0xff]
    %v110 = vld [vmem:[#allocation5 + $0x210] sm:$0xff]
    %v111 = vld [vmem:[#allocation5 + $0x218] sm:$0xff]
    %v112 = vld [vmem:[#allocation5 + $0x220] sm:$0xff]
    %v113 = vld [vmem:[#allocation5 + $0x228] sm:$0xff]
    %v114 = vld [vmem:[#allocation5 + $0x230] sm:$0xff]
    %v115 = vld [vmem:[#allocation5 + $0x238] sm:$0xff]
    %v116 = vld [vmem:[#allocation5 + $0x240] sm:$0xff]
    %v117 = vld [vmem:[#allocation5 + $0x248] sm:$0xff]
    %v118 = vld [vmem:[#allocation5 + $0x250] sm:$0xff]
    %v119 = vld [vmem:[#allocation5 + $0x258] sm:$0xff]
    %v120 = vld [vmem:[#allocation5 + $0x260] sm:$0xff]
    %v121 = vld [vmem:[#allocation5 + $0x268] sm:$0xff]
    %v122 = vld [vmem:[#allocation5 + $0x270] sm:$0xff]
    %v123 = vld [vmem:[#allocation5 + $0x278] sm:$0xff]
    %v124 = vld [vmem:[#allocation5 + $0x280] sm:$0xff]
    %v125 = vld [vmem:[#allocation5 + $0x288] sm:$0xff]
    %v126 = vld [vmem:[#allocation5 + $0x290] sm:$0xff]
    %v127 = vld [vmem:[#allocation5 + $0x298] sm:$0xff]
    %v128 = vld [vmem:[#allocation5 + $0x2a0] sm:$0xff]
    %v129 = vld [vmem:[#allocation5 + $0x2a8] sm:$0xff]
    %v130 = vld [vmem:[#allocation5 + $0x2b0] sm:$0xff]
    %v131 = vld [vmem:[#allocation5 + $0x2b8] sm:$0xff]
    %v132 = vld [vmem:[#allocation5 + $0x2c0] sm:$0xff]
    %v133 = vld [vmem:[#allocation5 + $0x2c8] sm:$0xff]
    %v134 = vld [vmem:[#allocation5 + $0x2d0] sm:$0xff]
    %v135 = vld [vmem:[#allocation5 + $0x2d8] sm:$0xff]
    %v136 = vld [vmem:[#allocation5 + $0x2e0] sm:$0xff]
    %v137 = vld [vmem:[#allocation5 + $0x2e8] sm:$0xff]
    %v138 = vld [vmem:[#allocation5 + $0x2f0] sm:$0xff]
    %v139 = vld [vmem:[#allocation5 + $0x2f8] sm:$0xff]
    %v140 = vld [vmem:[#allocation5 + $0x300] sm:$0xff]
    %v141 = vld [vmem:[#allocation5 + $0x308] sm:$0xff]
    %v142 = vld [vmem:[#allocation5 + $0x310] sm:$0xff]
    %v143 = vld [vmem:[#allocation5 + $0x318] sm:$0xff]
    %v144 = vld [vmem:[#allocation5 + $0x320] sm:$0xff]
    %v145 = vld [vmem:[#allocation5 + $0x328] sm:$0xff]
    %v146 = vld [vmem:[#allocation5 + $0x330] sm:$0xff]
    %v147 = vld [vmem:[#allocation5 + $0x338] sm:$0xff]
    %v148 = vld [vmem:[#allocation5 + $0x340] sm:$0xff]
    %v149 = vld [vmem:[#allocation5 + $0x348] sm:$0xff]
    %v150 = vld [vmem:[#allocation5 + $0x350] sm:$0xff]
    %v151 = vld [vmem:[#allocation5 + $0x358] sm:$0xff]
    %v152 = vld [vmem:[#allocation5 + $0x360] sm:$0xff]
    %v153 = vld [vmem:[#allocation5 + $0x368] sm:$0xff]
    %v154 = vld [vmem:[#allocation5 + $0x370] sm:$0xff]
    %v155 = vld [vmem:[#allocation5 + $0x378] sm:$0xff]
    %v156 = vld [vmem:[#allocation5 + $0x380] sm:$0xff]
    %v157 = vld [vmem:[#allocation5 + $0x388] sm:$0xff]
    %v158 = vld [vmem:[#allocation5 + $0x390] sm:$0xff]
    %v159 = vld [vmem:[#allocation5 + $0x398] sm:$0xff]
    %v160 = vld [vmem:[#allocation5 + $0x3a0] sm:$0xff]
    %v161 = vld [vmem:[#allocation5 + $0x3a8] sm:$0xff]
    %v162 = vld [vmem:[#allocation5 + $0x3b0] sm:$0xff]
    %v163 = vld [vmem:[#allocation5 + $0x3b8] sm:$0xff]
    %v164 = vld [vmem:[#allocation5 + $0x3c0] sm:$0xff]
    %v165 = vld [vmem:[#allocation5 + $0x3c8] sm:$0xff]
    %v166 = vld [vmem:[#allocation5 + $0x3d0] sm:$0xff]
    %v167 = vld [vmem:[#allocation5 + $0x3d8] sm:$0xff]
    %v168 = vld [vmem:[#allocation5 + $0x3e0] sm:$0xff]
    %v169 = vld [vmem:[#allocation5 + $0x3e8] sm:$0xff]
    %v170 = vld [vmem:[#allocation5 + $0x3f0] sm:$0xff]
    %v171 = vld [vmem:[#allocation5 + $0x3f8] sm:$0xff]
    %v172 = vld [vmem:[#allocation5 + $0x400] sm:$0xff]
    %v173 = vld [vmem:[#allocation5 + $0x408] sm:$0xff]
    %v174 = vld [vmem:[#allocation5 + $0x410] sm:$0xff]
    %v175 = vld [vmem:[#allocation5 + $0x418] sm:$0xff]
    %v176 = vld [vmem:[#allocation5 + $0x420] sm:$0xff]
    %v177 = vld [vmem:[#allocation5 + $0x428] sm:$0xff]
    %v178 = vld [vmem:[#allocation5 + $0x430] sm:$0xff]
    %v179 = vld [vmem:[#allocation5 + $0x438] sm:$0xff]
    %v180 = vld [vmem:[#allocation5 + $0x440] sm:$0xff]
    %v181 = vld [vmem:[#allocation5 + $0x448] sm:$0xff]
    %v182 = vld [vmem:[#allocation5 + $0x450] sm:$0xff]
    %v183 = vld [vmem:[#allocation5 + $0x458] sm:$0xff]
    %v184 = vld [vmem:[#allocation5 + $0x460] sm:$0xff]
    %v185 = vld [vmem:[#allocation5 + $0x468] sm:$0xff]
    %v186 = vld [vmem:[#allocation5 + $0x470] sm:$0xff]
    %v187 = vld [vmem:[#allocation5 + $0x478] sm:$0xff]
    %v188 = vld [vmem:[#allocation5 + $0x480] sm:$0xff]
    %v189 = vld [vmem:[#allocation5 + $0x488] sm:$0xff]
    %v190 = vld [vmem:[#allocation5 + $0x490] sm:$0xff]
    %v191 = vld [vmem:[#allocation5 + $0x498] sm:$0xff]
    %v192 = vld [vmem:[#allocation5 + $0x4a0] sm:$0xff]
    %v193 = vld [vmem:[#allocation5 + $0x4a8] sm:$0xff]
    %v194 = vld [vmem:[#allocation5 + $0x4b0] sm:$0xff]
    %v195 = vld [vmem:[#allocation5 + $0x4b8] sm:$0xff]
    %v196 = vld [vmem:[#allocation5 + $0x4c0] sm:$0xff]
    %v197 = vld [vmem:[#allocation5 + $0x4c8] sm:$0xff]
    %v198 = vld [vmem:[#allocation5 + $0x4d0] sm:$0xff]
    %v199 = vld [vmem:[#allocation5 + $0x4d8] sm:$0xff]
    %v200 = vld [vmem:[#allocation5 + $0x4e0] sm:$0xff]
    %v201 = vld [vmem:[#allocation5 + $0x4e8] sm:$0xff]
    %v202 = vld [vmem:[#allocation5 + $0x4f0] sm:$0xff]
    %v203 = vld [vmem:[#allocation5 + $0x4f8] sm:$0xff]
    %v204 = vld [vmem:[#allocation5 + $0x500] sm:$0xff]
    %v205 = vld [vmem:[#allocation5 + $0x508] sm:$0xff]
    %v206 = vld [vmem:[#allocation5 + $0x510] sm:$0xff]
    %v207 = vld [vmem:[#allocation5 + $0x518] sm:$0xff]
    %v208 = vld [vmem:[#allocation5 + $0x520] sm:$0xff]
    %v209 = vld [vmem:[#allocation5 + $0x528] sm:$0xff]
    %v210 = vld [vmem:[#allocation5 + $0x530] sm:$0xff]
    %v211 = vld [vmem:[#allocation5 + $0x538] sm:$0xff]
    %v212 = vld [vmem:[#allocation5 + $0x540] sm:$0xff]
    %v213 = vld [vmem:[#allocation5 + $0x548] sm:$0xff]
    %v214 = vld [vmem:[#allocation5 + $0x550] sm:$0xff]
    %v215 = vld [vmem:[#allocation5 + $0x558] sm:$0xff]
    %v216 = vld [vmem:[#allocation5 + $0x560] sm:$0xff]
    %v217 = vld [vmem:[#allocation5 + $0x568] sm:$0xff]
    %v218 = vld [vmem:[#allocation5 + $0x570] sm:$0xff]
    %v219 = vld [vmem:[#allocation5 + $0x578] sm:$0xff]
    %v220 = vld [vmem:[#allocation5 + $0x580] sm:$0xff]
    %v221 = vld [vmem:[#allocation5 + $0x588] sm:$0xff]
    %v222 = vld [vmem:[#allocation5 + $0x590] sm:$0xff]
    %v223 = vld [vmem:[#allocation5 + $0x598] sm:$0xff]
    %v224 = vld [vmem:[#allocation5 + $0x5a0] sm:$0xff]
    %v225 = vld [vmem:[#allocation5 + $0x5a8] sm:$0xff]
    %v226 = vld [vmem:[#allocation5 + $0x5b0] sm:$0xff]
    %v227 = vld [vmem:[#allocation5 + $0x5b8] sm:$0xff]
    %v228 = vld [vmem:[#allocation5 + $0x5c0] sm:$0xff]
    %v229 = vld [vmem:[#allocation5 + $0x5c8] sm:$0xff]
    %v230 = vld [vmem:[#allocation5 + $0x5d0] sm:$0xff]
    %v231 = vld [vmem:[#allocation5 + $0x5d8] sm:$0xff]
    %v232 = vld [vmem:[#allocation5 + $0x5e0] sm:$0xff]
    %v233 = vld [vmem:[#allocation5 + $0x5e8] sm:$0xff]
    %v234 = vld [vmem:[#allocation5 + $0x5f0] sm:$0xff]
    %v235 = vld [vmem:[#allocation5 + $0x5f8] sm:$0xff]
    %v236 = vld [vmem:[#allocation5 + $0x600] sm:$0xff]
    %v237 = vld [vmem:[#allocation5 + $0x608] sm:$0xff]
    %v238 = vld [vmem:[#allocation5 + $0x610] sm:$0xff]
    %v239 = vld [vmem:[#allocation5 + $0x618] sm:$0xff]
    %v240 = vld [vmem:[#allocation5 + $0x620] sm:$0xff]
    %v241 = vld [vmem:[#allocation5 + $0x628] sm:$0xff]
    %v242 = vld [vmem:[#allocation5 + $0x630] sm:$0xff]
    %v243 = vld [vmem:[#allocation5 + $0x638] sm:$0xff]
    %v244 = vld [vmem:[#allocation5 + $0x640] sm:$0xff]
    %v245 = vld [vmem:[#allocation5 + $0x648] sm:$0xff]
    %v246 = vld [vmem:[#allocation5 + $0x650] sm:$0xff]
    %v247 = vld [vmem:[#allocation5 + $0x658] sm:$0xff]
    %v248 = vld [vmem:[#allocation5 + $0x660] sm:$0xff]
    %v249 = vld [vmem:[#allocation5 + $0x668] sm:$0xff]
    %v250 = vld [vmem:[#allocation5 + $0x670] sm:$0xff]
    %v251 = vld [vmem:[#allocation5 + $0x678] sm:$0xff]
    %v252 = vld [vmem:[#allocation5 + $0x680] sm:$0xff]
    %v253 = vld [vmem:[#allocation5 + $0x688] sm:$0xff]
    %v254 = vld [vmem:[#allocation5 + $0x690] sm:$0xff]
    %v255 = vld [vmem:[#allocation5 + $0x698] sm:$0xff]
    %v256 = vld [vmem:[#allocation5 + $0x6a0] sm:$0xff]
    %v257 = vld [vmem:[#allocation5 + $0x6a8] sm:$0xff]
    %v258 = vld [vmem:[#allocation5 + $0x6b0] sm:$0xff]
    %v259 = vld [vmem:[#allocation5 + $0x6b8] sm:$0xff]
    %v260 = vld [vmem:[#allocation5 + $0x6c0] sm:$0xff]
    %v261 = vld [vmem:[#allocation5 + $0x6c8] sm:$0xff]
    %v262 = vld [vmem:[#allocation5 + $0x6d0] sm:$0xff]
    %v263 = vld [vmem:[#allocation5 + $0x6d8] sm:$0xff]
    %v264 = vld [vmem:[#allocation5 + $0x6e0] sm:$0xff]
    %v265 = vld [vmem:[#allocation5 + $0x6e8] sm:$0xff]
    %v266 = vld [vmem:[#allocation5 + $0x6f0] sm:$0xff]
    %v267 = vld [vmem:[#allocation5 + $0x6f8] sm:$0xff]
    %v268 = vld [vmem:[#allocation5 + $0x700] sm:$0xff]
    %v269 = vld [vmem:[#allocation5 + $0x708] sm:$0xff]
    %v270 = vld [vmem:[#allocation5 + $0x710] sm:$0xff]
    %v271 = vld [vmem:[#allocation5 + $0x718] sm:$0xff]
    %v272 = vld [vmem:[#allocation5 + $0x720] sm:$0xff]
    %v273 = vld [vmem:[#allocation5 + $0x728] sm:$0xff]
    %v274 = vld [vmem:[#allocation5 + $0x730] sm:$0xff]
    %v275 = vld [vmem:[#allocation5 + $0x738] sm:$0xff]
    %v276 = vld [vmem:[#allocation5 + $0x740] sm:$0xff]
    %v277 = vld [vmem:[#allocation5 + $0x748] sm:$0xff]
    %v278 = vld [vmem:[#allocation5 + $0x750] sm:$0xff]
    %v279 = vld [vmem:[#allocation5 + $0x758] sm:$0xff]
    %v280 = vld [vmem:[#allocation5 + $0x760] sm:$0xff]
    %v281 = vld [vmem:[#allocation5 + $0x768] sm:$0xff]
    %v282 = vld [vmem:[#allocation5 + $0x770] sm:$0xff]
    %v283 = vld [vmem:[#allocation5 + $0x778] sm:$0xff]
    %v284 = vld [vmem:[#allocation5 + $0x780] sm:$0xff]
    %v285 = vld [vmem:[#allocation5 + $0x788] sm:$0xff]
    %v286 = vld [vmem:[#allocation5 + $0x790] sm:$0xff]
    %v287 = vld [vmem:[#allocation5 + $0x798] sm:$0xff]
    %v288 = vld [vmem:[#allocation5 + $0x7a0] sm:$0xff]
    %v289 = vld [vmem:[#allocation5 + $0x7a8] sm:$0xff]
    %v290 = vld [vmem:[#allocation5 + $0x7b0] sm:$0xff]
    %v291 = vld [vmem:[#allocation5 + $0x7b8] sm:$0xff]
    %v292 = vld [vmem:[#allocation5 + $0x7c0] sm:$0xff]
    %v293 = vld [vmem:[#allocation5 + $0x7c8] sm:$0xff]
    %v294 = vld [vmem:[#allocation5 + $0x7d0] sm:$0xff]
    %v295 = vld [vmem:[#allocation5 + $0x7d8] sm:$0xff]
    %v296 = vld [vmem:[#allocation5 + $0x7e0] sm:$0xff]
    %v297 = vld [vmem:[#allocation5 + $0x7e8] sm:$0xff]
    %v298 = vld [vmem:[#allocation5 + $0x7f0] sm:$0xff]
    %v299 = vld [vmem:[#allocation5 + $0x7f8] sm:$0xff]
    %v300 = vld [vmem:[#allocation5 + $0x800] sm:$0xff]
    %v301 = vld [vmem:[#allocation5 + $0x808] sm:$0xff]
    %v302 = vld [vmem:[#allocation5 + $0x810] sm:$0xff]
    %v303 = vld [vmem:[#allocation5 + $0x818] sm:$0xff]
    %v304 = vld [vmem:[#allocation5 + $0x820] sm:$0xff]
    %v305 = vld [vmem:[#allocation5 + $0x828] sm:$0xff]
    %v306 = vld [vmem:[#allocation5 + $0x830] sm:$0xff]
    %v307 = vld [vmem:[#allocation5 + $0x838] sm:$0xff]
    %v308 = vld [vmem:[#allocation5 + $0x840] sm:$0xff]
    %v309 = vld [vmem:[#allocation5 + $0x848] sm:$0xff]
    %v310 = vld [vmem:[#allocation5 + $0x850] sm:$0xff]
    %v311 = vld [vmem:[#allocation5 + $0x858] sm:$0xff]
    %v312 = vld [vmem:[#allocation5 + $0x860] sm:$0xff]
    %v313 = vld [vmem:[#allocation5 + $0x868] sm:$0xff]
    %v314 = vld [vmem:[#allocation5 + $0x870] sm:$0xff]
    %v315 = vld [vmem:[#allocation5 + $0x878] sm:$0xff]
    %v316 = vld [vmem:[#allocation5 + $0x880] sm:$0xff]
    %v317 = vld [vmem:[#allocation5 + $0x888] sm:$0xff]
    %v318 = vld [vmem:[#allocation5 + $0x890] sm:$0xff]
    %v319 = vld [vmem:[#allocation5 + $0x898] sm:$0xff]
    %v320 = vld [vmem:[#allocation5 + $0x8a0] sm:$0xff]
    %v321 = vld [vmem:[#allocation5 + $0x8a8] sm:$0xff]
    %v322 = vld [vmem:[#allocation5 + $0x8b0] sm:$0xff]
    %v323 = vld [vmem:[#allocation5 + $0x8b8] sm:$0xff]
    %v324 = vld [vmem:[#allocation5 + $0x8c0] sm:$0xff]
    %v325 = vld [vmem:[#allocation5 + $0x8c8] sm:$0xff]
    %v326 = vld [vmem:[#allocation5 + $0x8d0] sm:$0xff]
    %v327 = vld [vmem:[#allocation5 + $0x8d8] sm:$0xff]
    %v328 = vld [vmem:[#allocation5 + $0x8e0] sm:$0xff]
    %v329 = vld [vmem:[#allocation5 + $0x8e8] sm:$0xff]
    %v330 = vld [vmem:[#allocation5 + $0x8f0] sm:$0xff]
    %v331 = vld [vmem:[#allocation5 + $0x8f8] sm:$0xff]
    %v332 = vld [vmem:[#allocation5 + $0x900] sm:$0xff]
    %v333 = vld [vmem:[#allocation5 + $0x908] sm:$0xff]
    %v334 = vld [vmem:[#allocation5 + $0x910] sm:$0xff]
    %v335 = vld [vmem:[#allocation5 + $0x918] sm:$0xff]
    %v336 = vld [vmem:[#allocation5 + $0x920] sm:$0xff]
    %v337 = vld [vmem:[#allocation5 + $0x928] sm:$0xff]
    %v338 = vld [vmem:[#allocation5 + $0x930] sm:$0xff]
    %v339 = vld [vmem:[#allocation5 + $0x938] sm:$0xff]
    %v340 = vld [vmem:[#allocation5 + $0x940] sm:$0xff]
    %v341 = vld [vmem:[#allocation5 + $0x948] sm:$0xff]
    %v342 = vld [vmem:[#allocation5 + $0x950] sm:$0xff]
    %v343 = vld [vmem:[#allocation5 + $0x958] sm:$0xff]
    %v344 = vld [vmem:[#allocation5 + $0x960] sm:$0xff]
    %v345 = vld [vmem:[#allocation5 + $0x968] sm:$0xff]
    %v346 = vld [vmem:[#allocation5 + $0x970] sm:$0xff]
    %v347 = vld [vmem:[#allocation5 + $0x978] sm:$0xff]
    %v348 = vld [vmem:[#allocation5 + $0x980] sm:$0xff]
    %v349 = vld [vmem:[#allocation5 + $0x988] sm:$0xff]
    %v350 = vld [vmem:[#allocation5 + $0x990] sm:$0xff]
    %v351 = vld [vmem:[#allocation5 + $0x998] sm:$0xff]
    %v352 = vld [vmem:[#allocation5 + $0x9a0] sm:$0xff]
    %v353 = vld [vmem:[#allocation5 + $0x9a8] sm:$0xff]
    %v354 = vld [vmem:[#allocation5 + $0x9b0] sm:$0xff]
    %v355 = vld [vmem:[#allocation5 + $0x9b8] sm:$0xff]
    %v356 = vld [vmem:[#allocation5 + $0x9c0] sm:$0xff]
    %v357 = vld [vmem:[#allocation5 + $0x9c8] sm:$0xff]
    %v358 = vld [vmem:[#allocation5 + $0x9d0] sm:$0xff]
    %v359 = vld [vmem:[#allocation5 + $0x9d8] sm:$0xff]
    %v360 = vld [vmem:[#allocation5 + $0x9e0] sm:$0xff]
    %v361 = vld [vmem:[#allocation5 + $0x9e8] sm:$0xff]
    %v362 = vld [vmem:[#allocation5 + $0x9f0] sm:$0xff]
    %v363 = vld [vmem:[#allocation5 + $0x9f8] sm:$0xff]
    %v364 = vld [vmem:[#allocation5 + $0xa00] sm:$0xff]
    %v365 = vld [vmem:[#allocation5 + $0xa08] sm:$0xff]
    %v366 = vld [vmem:[#allocation5 + $0xa10] sm:$0xff]
    %v367 = vld [vmem:[#allocation5 + $0xa18] sm:$0xff]
    %v368 = vld [vmem:[#allocation5 + $0xa20] sm:$0xff]
    %v369 = vld [vmem:[#allocation5 + $0xa28] sm:$0xff]
    %v370 = vld [vmem:[#allocation5 + $0xa30] sm:$0xff]
    %v371 = vld [vmem:[#allocation5 + $0xa38] sm:$0xff]
    %v372 = vld [vmem:[#allocation5 + $0xa40] sm:$0xff]
    %v373 = vld [vmem:[#allocation5 + $0xa48] sm:$0xff]
    %v374 = vld [vmem:[#allocation5 + $0xa50] sm:$0xff]
    %v375 = vld [vmem:[#allocation5 + $0xa58] sm:$0xff]
    %v376 = vld [vmem:[#allocation5 + $0xa60] sm:$0xff]
    %v377 = vld [vmem:[#allocation5 + $0xa68] sm:$0xff]
    %v378 = vld [vmem:[#allocation5 + $0xa70] sm:$0xff]
    %v379 = vld [vmem:[#allocation5 + $0xa78] sm:$0xff]
    %v380 = vld [vmem:[#allocation5 + $0xa80] sm:$0xff]
    %v381 = vld [vmem:[#allocation5 + $0xa88] sm:$0xff]
    %v382 = vld [vmem:[#allocation5 + $0xa90] sm:$0xff]
    %v383 = vld [vmem:[#allocation5 + $0xa98] sm:$0xff]
    %v384 = vld [vmem:[#allocation5 + $0xaa0] sm:$0xff]
    %v385 = vld [vmem:[#allocation5 + $0xaa8] sm:$0xff]
    %v386 = vld [vmem:[#allocation5 + $0xab0] sm:$0xff]
    %v387 = vld [vmem:[#allocation5 + $0xab8] sm:$0xff]
    %v388 = vld [vmem:[#allocation5 + $0xac0] sm:$0xff]
    %v389 = vld [vmem:[#allocation5 + $0xac8] sm:$0xff]
    %v390 = vld [vmem:[#allocation5 + $0xad0] sm:$0xff]
    %v391 = vld [vmem:[#allocation5 + $0xad8] sm:$0xff]
    %v392 = vld [vmem:[#allocation5 + $0xae0] sm:$0xff]
    %v393 = vld [vmem:[#allocation5 + $0xae8] sm:$0xff]
    %v394 = vld [vmem:[#allocation5 + $0xaf0] sm:$0xff]
    %v395 = vld [vmem:[#allocation5 + $0xaf8] sm:$0xff]
    %v396 = vld [vmem:[#allocation5 + $0xb00] sm:$0xff]
    %v397 = vld [vmem:[#allocation5 + $0xb08] sm:$0xff]
    %v398 = vld [vmem:[#allocation5 + $0xb10] sm:$0xff]
    %v399 = vld [vmem:[#allocation5 + $0xb18] sm:$0xff]
    %v400 = vld [vmem:[#allocation5 + $0xb20] sm:$0xff]
    %v401 = vld [vmem:[#allocation5 + $0xb28] sm:$0xff]
    %v402 = vld [vmem:[#allocation5 + $0xb30] sm:$0xff]
    %v403 = vld [vmem:[#allocation5 + $0xb38] sm:$0xff]
    %v404 = vld [vmem:[#allocation5 + $0xb40] sm:$0xff]
    %v405 = vld [vmem:[#allocation5 + $0xb48] sm:$0xff]
    %v406 = vld [vmem:[#allocation5 + $0xb50] sm:$0xff]
    %v407 = vld [vmem:[#allocation5 + $0xb58] sm:$0xff]
    %v408 = vld [vmem:[#allocation5 + $0xb60] sm:$0xff]
    %v409 = vld [vmem:[#allocation5 + $0xb68] sm:$0xff]
    %v410 = vld [vmem:[#allocation5 + $0xb70] sm:$0xff]
    %v411 = vld [vmem:[#allocation5 + $0xb78] sm:$0xff]
    %v412 = vld [vmem:[#allocation5 + $0xb80] sm:$0xff]
    %v413 = vld [vmem:[#allocation5 + $0xb88] sm:$0xff]
    %v414 = vld [vmem:[#allocation5 + $0xb90] sm:$0xff]
    %v415 = vld [vmem:[#allocation5 + $0xb98] sm:$0xff]
    %v416 = vld [vmem:[#allocation5 + $0xba0] sm:$0xff]
    %v417 = vld [vmem:[#allocation5 + $0xba8] sm:$0xff]
    %v418 = vld [vmem:[#allocation5 + $0xbb0] sm:$0xff]
    %v419 = vld [vmem:[#allocation5 + $0xbb8] sm:$0xff]
    %v420 = vld [vmem:[#allocation5 + $0xbc0] sm:$0xff]
    %v421 = vld [vmem:[#allocation5 + $0xbc8] sm:$0xff]
    %v422 = vld [vmem:[#allocation5 + $0xbd0] sm:$0xff]
    %v423 = vld [vmem:[#allocation5 + $0xbd8] sm:$0xff]
    %v424 = vld [vmem:[#allocation5 + $0xbe0] sm:$0xff]
    %v425 = vld [vmem:[#allocation5 + $0xbe8] sm:$0xff]
    %v426 = vld [vmem:[#allocation5 + $0xbf0] sm:$0xff]
    %v427 = vld [vmem:[#allocation5 + $0xbf8] sm:$0xff]
    %v428 = vld [vmem:[#allocation5 + $0xc00] sm:$0xff]
    %v429 = vld [vmem:[#allocation5 + $0xc08] sm:$0xff]
    %v430 = vld [vmem:[#allocation5 + $0xc10] sm:$0xff]
    %v431 = vld [vmem:[#allocation5 + $0xc18] sm:$0xff]
    %v432 = vld [vmem:[#allocation5 + $0xc20] sm:$0xff]
    %v433 = vld [vmem:[#allocation5 + $0xc28] sm:$0xff]
    %v434 = vld [vmem:[#allocation5 + $0xc30] sm:$0xff]
    %v435 = vld [vmem:[#allocation5 + $0xc38] sm:$0xff]
    %v436 = vld [vmem:[#allocation5 + $0xc40] sm:$0xff]
    %v437 = vld [vmem:[#allocation5 + $0xc48] sm:$0xff]
    %v438 = vld [vmem:[#allocation5 + $0xc50] sm:$0xff]
    %v439 = vld [vmem:[#allocation5 + $0xc58] sm:$0xff]
    %v440 = vld [vmem:[#allocation5 + $0xc60] sm:$0xff]
    %v441 = vld [vmem:[#allocation5 + $0xc68] sm:$0xff]
    %v442 = vld [vmem:[#allocation5 + $0xc70] sm:$0xff]
    %v443 = vld [vmem:[#allocation5 + $0xc78] sm:$0xff]
    %v444 = vld [vmem:[#allocation2] sm:$0xff]
    %v445 = vld [vmem:[#allocation2 + $0x8] sm:$0xff]
    %v446 = vld [vmem:[#allocation2 + $0x10] sm:$0xff]
    %v447 = vld [vmem:[#allocation2 + $0x18] sm:$0xff]
    %v448 = vld [vmem:[#allocation2 + $0x20] sm:$0xff]
    %v449 = vld [vmem:[#allocation2 + $0x28] sm:$0xff]
    %v450 = vld [vmem:[#allocation2 + $0x30] sm:$0xff]
    %v451 = vld [vmem:[#allocation2 + $0x38] sm:$0xff]
    %v452 = vld [vmem:[#allocation2 + $0x40] sm:$0xff]
    %v453 = vld [vmem:[#allocation2 + $0x48] sm:$0xff]
    %v454 = vld [vmem:[#allocation2 + $0x50] sm:$0xff]
    %v455 = vld [vmem:[#allocation2 + $0x58] sm:$0xff]
    %v456 = vld [vmem:[#allocation2 + $0x60] sm:$0xff]
    %v457 = vld [vmem:[#allocation2 + $0x68] sm:$0xff]
    %v458 = vld [vmem:[#allocation2 + $0x70] sm:$0xff]
    %v459 = vld [vmem:[#allocation2 + $0x78] sm:$0xff]
    %v460 = vld [vmem:[#allocation2 + $0x80] sm:$0xff]
    %v461 = vld [vmem:[#allocation2 + $0x88] sm:$0xff]
    %v462 = vld [vmem:[#allocation2 + $0x90] sm:$0xff]
    %v463 = vld [vmem:[#allocation2 + $0x98] sm:$0xff]
    %v464 = vld [vmem:[#allocation2 + $0xa0] sm:$0xff]
    %v465 = vld [vmem:[#allocation2 + $0xa8] sm:$0xff]
    %v466 = vld [vmem:[#allocation2 + $0xb0] sm:$0xff]
    %v467 = vld [vmem:[#allocation2 + $0xb8] sm:$0xff]
    %v468 = vld [vmem:[#allocation2 + $0xc0] sm:$0xff]
    %v469 = vld [vmem:[#allocation2 + $0xc8] sm:$0xff]
    %v470 = vld [vmem:[#allocation2 + $0xd0] sm:$0xff]
    %v471 = vld [vmem:[#allocation2 + $0xd8] sm:$0xff]
    %v472 = vld [vmem:[#allocation2 + $0xe0] sm:$0xff]
    %v473 = vld [vmem:[#allocation2 + $0xe8] sm:$0xff]
    %v474 = vld [vmem:[#allocation2 + $0xf0] sm:$0xff]
    %v475 = vld [vmem:[#allocation2 + $0xf8] sm:$0xff]
    %v476 = vld [vmem:[#allocation2 + $0x100] sm:$0xff]
    %v477 = vld [vmem:[#allocation2 + $0x108] sm:$0xff]
    %v478 = vld [vmem:[#allocation2 + $0x110] sm:$0xff]
    %v479 = vld [vmem:[#allocation2 + $0x118] sm:$0xff]
    %v480 = vld [vmem:[#allocation2 + $0x120] sm:$0xff]
    %v481 = vld [vmem:[#allocation2 + $0x128] sm:$0xff]
    %v482 = vld [vmem:[#allocation2 + $0x130] sm:$0xff]
    %v483 = vld [vmem:[#allocation2 + $0x138] sm:$0xff]
    %v484 = vld [vmem:[#allocation2 + $0x140] sm:$0xff]
    %v485 = vld [vmem:[#allocation2 + $0x148] sm:$0xff]
    %v486 = vld [vmem:[#allocation2 + $0x150] sm:$0xff]
    %v487 = vld [vmem:[#allocation2 + $0x158] sm:$0xff]
    %v488 = vld [vmem:[#allocation2 + $0x160] sm:$0xff]
    %v489 = vld [vmem:[#allocation2 + $0x168] sm:$0xff]
    %v490 = vld [vmem:[#allocation2 + $0x170] sm:$0xff]
    %v491 = vld [vmem:[#allocation2 + $0x178] sm:$0xff]
    %v492 = vld [vmem:[#allocation2 + $0x180] sm:$0xff]
    %v493 = vld [vmem:[#allocation2 + $0x188] sm:$0xff]
    %v494 = vld [vmem:[#allocation2 + $0x190] sm:$0xff]
    %v495 = vld [vmem:[#allocation2 + $0x198] sm:$0xff]
    %v496 = vld [vmem:[#allocation2 + $0x1a0] sm:$0xff]
    %v497 = vld [vmem:[#allocation2 + $0x1a8] sm:$0xff]
    %v498 = vld [vmem:[#allocation2 + $0x1b0] sm:$0xff]
    %v499 = vld [vmem:[#allocation2 + $0x1b8] sm:$0xff]
    %v500 = vld [vmem:[#allocation2 + $0x1c0] sm:$0xff]
    %v501 = vld [vmem:[#allocation2 + $0x1c8] sm:$0xff]
    %v502 = vld [vmem:[#allocation2 + $0x1d0] sm:$0xff]
    %v503 = vld [vmem:[#allocation2 + $0x1d8] sm:$0xff]
    %v504 = vld [vmem:[#allocation2 + $0x1e0] sm:$0xff]
    %v505 = vld [vmem:[#allocation2 + $0x1e8] sm:$0xff]
    %v506 = vld [vmem:[#allocation2 + $0x1f0] sm:$0xff]
    %v507 = vld [vmem:[#allocation2 + $0x1f8] sm:$0xff]
    %v508 = vld [vmem:[#allocation2 + $0x200] sm:$0xff]
    %v509 = vld [vmem:[#allocation2 + $0x208] sm:$0xff]
    %v510 = vld [vmem:[#allocation2 + $0x210] sm:$0xff]
    %v511 = vld [vmem:[#allocation2 + $0x218] sm:$0xff]
    %v512 = vld [vmem:[#allocation2 + $0x220] sm:$0xff]
    %v513 = vld [vmem:[#allocation2 + $0x228] sm:$0xff]
    %v514 = vld [vmem:[#allocation2 + $0x230] sm:$0xff]
    %v515 = vld [vmem:[#allocation2 + $0x238] sm:$0xff]
    %v516 = vld [vmem:[#allocation2 + $0x240] sm:$0xff]
    %v517 = vld [vmem:[#allocation2 + $0x248] sm:$0xff]
    %v518 = vld [vmem:[#allocation2 + $0x250] sm:$0xff]
    %v519 = vld [vmem:[#allocation2 + $0x258] sm:$0xff]
    %v520 = vld [vmem:[#allocation2 + $0x260] sm:$0xff]
    %v521 = vld [vmem:[#allocation2 + $0x268] sm:$0xff]
    %v522 = vld [vmem:[#allocation2 + $0x270] sm:$0xff]
    %v523 = vld [vmem:[#allocation2 + $0x278] sm:$0xff]
    %v524 = vld [vmem:[#allocation2 + $0x280] sm:$0xff]
    %v525 = vld [vmem:[#allocation2 + $0x288] sm:$0xff]
    %v526 = vld [vmem:[#allocation2 + $0x290] sm:$0xff]
    %v527 = vld [vmem:[#allocation2 + $0x298] sm:$0xff]
    %v528 = vld [vmem:[#allocation2 + $0x2a0] sm:$0xff]
    %v529 = vld [vmem:[#allocation2 + $0x2a8] sm:$0xff]
    %v530 = vld [vmem:[#allocation2 + $0x2b0] sm:$0xff]
    %v531 = vld [vmem:[#allocation2 + $0x2b8] sm:$0xff]
    %v532 = vld [vmem:[#allocation2 + $0x2c0] sm:$0xff]
    %v533 = vld [vmem:[#allocation2 + $0x2c8] sm:$0xff]
    %v534 = vld [vmem:[#allocation2 + $0x2d0] sm:$0xff]
    %v535 = vld [vmem:[#allocation2 + $0x2d8] sm:$0xff]
    %v536 = vld [vmem:[#allocation2 + $0x2e0] sm:$0xff]
    %v537 = vld [vmem:[#allocation2 + $0x2e8] sm:$0xff]
    %v538 = vld [vmem:[#allocation2 + $0x2f0] sm:$0xff]
    %v539 = vld [vmem:[#allocation2 + $0x2f8] sm:$0xff]
    %v540 = vld [vmem:[#allocation2 + $0x300] sm:$0xff]
    %v541 = vld [vmem:[#allocation2 + $0x308] sm:$0xff]
    %v542 = vld [vmem:[#allocation2 + $0x310] sm:$0xff]
    %v543 = vld [vmem:[#allocation2 + $0x318] sm:$0xff]
    %v544 = vld [vmem:[#allocation2 + $0x320] sm:$0xff]
    %v545 = vld [vmem:[#allocation2 + $0x328] sm:$0xff]
    %v546 = vld [vmem:[#allocation2 + $0x330] sm:$0xff]
    %v547 = vld [vmem:[#allocation2 + $0x338] sm:$0xff]
    %v548 = vld [vmem:[#allocation2 + $0x340] sm:$0xff]
    %v549 = vld [vmem:[#allocation2 + $0x348] sm:$0xff]
    %v550 = vld [vmem:[#allocation2 + $0x350] sm:$0xff]
    %v551 = vld [vmem:[#allocation2 + $0x358] sm:$0xff]
    %v552 = vld [vmem:[#allocation2 + $0x360] sm:$0xff]
    %v553 = vld [vmem:[#allocation2 + $0x368] sm:$0xff]
    %v554 = vld [vmem:[#allocation2 + $0x370] sm:$0xff]
    %v555 = vld [vmem:[#allocation2 + $0x378] sm:$0xff]
    %v556 = vld [vmem:[#allocation2 + $0x380] sm:$0xff]
    %v557 = vld [vmem:[#allocation2 + $0x388] sm:$0xff]
    %v558 = vld [vmem:[#allocation2 + $0x390] sm:$0xff]
    %v559 = vld [vmem:[#allocation2 + $0x398] sm:$0xff]
    %v560 = vld [vmem:[#allocation2 + $0x3a0] sm:$0xff]
    %v561 = vld [vmem:[#allocation2 + $0x3a8] sm:$0xff]
    %v562 = vld [vmem:[#allocation2 + $0x3b0] sm:$0xff]
    %v563 = vld [vmem:[#allocation2 + $0x3b8] sm:$0xff]
    %v564 = vld [vmem:[#allocation2 + $0x3c0] sm:$0xff]
    %v565 = vld [vmem:[#allocation2 + $0x3c8] sm:$0xff]
    %v566 = vld [vmem:[#allocation2 + $0x3d0] sm:$0xff]
    %v567 = vld [vmem:[#allocation2 + $0x3d8] sm:$0xff]
    %v568 = vld [vmem:[#allocation2 + $0x3e0] sm:$0xff]
    %v569 = vld [vmem:[#allocation2 + $0x3e8] sm:$0xff]
    %v570 = vld [vmem:[#allocation2 + $0x3f0] sm:$0xff]
    %v571 = vld [vmem:[#allocation2 + $0x3f8] sm:$0xff]
    %v572 = vld [vmem:[#allocation2 + $0x400] sm:$0xff]
    %v573 = vld [vmem:[#allocation2 + $0x408] sm:$0xff]
    %v574 = vld [vmem:[#allocation2 + $0x410] sm:$0xff]
    %v575 = vld [vmem:[#allocation2 + $0x418] sm:$0xff]
    %v576 = vld [vmem:[#allocation2 + $0x420] sm:$0xff]
    %v577 = vld [vmem:[#allocation2 + $0x428] sm:$0xff]
    %v578 = vld [vmem:[#allocation2 + $0x430] sm:$0xff]
    %v579 = vld [vmem:[#allocation2 + $0x438] sm:$0xff]
    %v580 = vld [vmem:[#allocation2 + $0x440] sm:$0xff]
    %v581 = vld [vmem:[#allocation2 + $0x448] sm:$0xff]
    %v582 = vld [vmem:[#allocation2 + $0x450] sm:$0xff]
    %v583 = vld [vmem:[#allocation2 + $0x458] sm:$0xff]
    %v584 = vld [vmem:[#allocation2 + $0x460] sm:$0xff]
    %v585 = vld [vmem:[#allocation2 + $0x468] sm:$0xff]
    %v586 = vld [vmem:[#allocation2 + $0x470] sm:$0xff]
    %v587 = vld [vmem:[#allocation2 + $0x478] sm:$0xff]
    %v588 = vld [vmem:[#allocation2 + $0x480] sm:$0xff]
    %v589 = vld [vmem:[#allocation2 + $0x488] sm:$0xff]
    %v590 = vld [vmem:[#allocation2 + $0x490] sm:$0xff]
    %v591 = vld [vmem:[#allocation2 + $0x498] sm:$0xff]
    %v592 = vld [vmem:[#allocation2 + $0x4a0] sm:$0xff]
    %v593 = vld [vmem:[#allocation2 + $0x4a8] sm:$0xff]
    %v594 = vld [vmem:[#allocation2 + $0x4b0] sm:$0xff]
    %v595 = vld [vmem:[#allocation2 + $0x4b8] sm:$0xff]
    %v596 = vld [vmem:[#allocation2 + $0x4c0] sm:$0xff]
    %v597 = vld [vmem:[#allocation2 + $0x4c8] sm:$0xff]
    %v598 = vld [vmem:[#allocation2 + $0x4d0] sm:$0xff]
    %v599 = vld [vmem:[#allocation2 + $0x4d8] sm:$0xff]
    %v600 = vld [vmem:[#allocation2 + $0x4e0] sm:$0xff]
    %v601 = vld [vmem:[#allocation2 + $0x4e8] sm:$0xff]
    %v602 = vld [vmem:[#allocation2 + $0x4f0] sm:$0xff]
    %v603 = vld [vmem:[#allocation2 + $0x4f8] sm:$0xff]
    %v604 = vld [vmem:[#allocation2 + $0x500] sm:$0xff]
    %v605 = vld [vmem:[#allocation2 + $0x508] sm:$0xff]
    %v606 = vld [vmem:[#allocation2 + $0x510] sm:$0xff]
    %v607 = vld [vmem:[#allocation2 + $0x518] sm:$0xff]
    %v608 = vld [vmem:[#allocation2 + $0x520] sm:$0xff]
    %v609 = vld [vmem:[#allocation2 + $0x528] sm:$0xff]
    %v610 = vld [vmem:[#allocation2 + $0x530] sm:$0xff]
    %v611 = vld [vmem:[#allocation2 + $0x538] sm:$0xff]
    %v612 = vld [vmem:[#allocation2 + $0x540] sm:$0xff]
    %v613 = vld [vmem:[#allocation2 + $0x548] sm:$0xff]
    %v614 = vld [vmem:[#allocation2 + $0x550] sm:$0xff]
    %v615 = vld [vmem:[#allocation2 + $0x558] sm:$0xff]
    %v616 = vld [vmem:[#allocation2 + $0x560] sm:$0xff]
    %v617 = vld [vmem:[#allocation2 + $0x568] sm:$0xff]
    %v618 = vld [vmem:[#allocation2 + $0x570] sm:$0xff]
    %v619 = vld [vmem:[#allocation2 + $0x578] sm:$0xff]
    %v620 = vld [vmem:[#allocation2 + $0x580] sm:$0xff]
    %v621 = vld [vmem:[#allocation2 + $0x588] sm:$0xff]
    %v622 = vld [vmem:[#allocation2 + $0x590] sm:$0xff]
    %v623 = vld [vmem:[#allocation2 + $0x598] sm:$0xff]
    %v624 = vld [vmem:[#allocation2 + $0x5a0] sm:$0xff]
    %v625 = vld [vmem:[#allocation2 + $0x5a8] sm:$0xff]
    %v626 = vld [vmem:[#allocation2 + $0x5b0] sm:$0xff]
    %v627 = vld [vmem:[#allocation2 + $0x5b8] sm:$0xff]
    %v628 = vld [vmem:[#allocation2 + $0x5c0] sm:$0xff]
    %v629 = vld [vmem:[#allocation2 + $0x5c8] sm:$0xff]
    %v630 = vld [vmem:[#allocation2 + $0x5d0] sm:$0xff]
    %v631 = vld [vmem:[#allocation2 + $0x5d8] sm:$0xff]
    %v632 = vld [vmem:[#allocation2 + $0x5e0] sm:$0xff]
    %v633 = vld [vmem:[#allocation2 + $0x5e8] sm:$0xff]
    %v634 = vld [vmem:[#allocation2 + $0x5f0] sm:$0xff]
    %v635 = vld [vmem:[#allocation2 + $0x5f8] sm:$0xff]
    %v636 = vld [vmem:[#allocation2 + $0x600] sm:$0xff]
    %v637 = vld [vmem:[#allocation2 + $0x608] sm:$0xff]
    %v638 = vld [vmem:[#allocation2 + $0x610] sm:$0xff]
    %v639 = vld [vmem:[#allocation2 + $0x618] sm:$0xff]
    %v640 = vld [vmem:[#allocation2 + $0x620] sm:$0xff]
    %v641 = vld [vmem:[#allocation2 + $0x628] sm:$0xff]
    %v642 = vld [vmem:[#allocation2 + $0x630] sm:$0xff]
    %v643 = vld [vmem:[#allocation2 + $0x638] sm:$0xff]
    %v644 = vld [vmem:[#allocation2 + $0x640] sm:$0xff]
    %v645 = vld [vmem:[#allocation2 + $0x648] sm:$0xff]
    %v646 = vld [vmem:[#allocation2 + $0x650] sm:$0xff]
    %v647 = vld [vmem:[#allocation2 + $0x658] sm:$0xff]
    %v648 = vld [vmem:[#allocation2 + $0x660] sm:$0xff]
    %v649 = vld [vmem:[#allocation2 + $0x668] sm:$0xff]
    %v650 = vld [vmem:[#allocation2 + $0x670] sm:$0xff]
    %v651 = vld [vmem:[#allocation2 + $0x678] sm:$0xff]
    %v652 = vld [vmem:[#allocation2 + $0x680] sm:$0xff]
    %v653 = vld [vmem:[#allocation2 + $0x688] sm:$0xff]
    %v654 = vld [vmem:[#allocation2 + $0x690] sm:$0xff]
    %v655 = vld [vmem:[#allocation2 + $0x698] sm:$0xff]
    %v656 = vld [vmem:[#allocation2 + $0x6a0] sm:$0xff]
    %v657 = vld [vmem:[#allocation2 + $0x6a8] sm:$0xff]
    %v658 = vld [vmem:[#allocation2 + $0x6b0] sm:$0xff]
    %v659 = vld [vmem:[#allocation2 + $0x6b8] sm:$0xff]
    %v660 = vld [vmem:[#allocation2 + $0x6c0] sm:$0xff]
    %v661 = vld [vmem:[#allocation2 + $0x6c8] sm:$0xff]
    %v662 = vld [vmem:[#allocation2 + $0x6d0] sm:$0xff]
    %v663 = vld [vmem:[#allocation2 + $0x6d8] sm:$0xff]
    %v664 = vld [vmem:[#allocation2 + $0x6e0] sm:$0xff]
    %v665 = vld [vmem:[#allocation2 + $0x6e8] sm:$0xff]
    %v666 = vld [vmem:[#allocation2 + $0x6f0] sm:$0xff]
    %v667 = vld [vmem:[#allocation2 + $0x6f8] sm:$0xff]
    %v668 = vld [vmem:[#allocation2 + $0x700] sm:$0xff]
    %v669 = vld [vmem:[#allocation2 + $0x708] sm:$0xff]
    %v670 = vld [vmem:[#allocation2 + $0x710] sm:$0xff]
    %v671 = vld [vmem:[#allocation2 + $0x718] sm:$0xff]
    %v672 = vld [vmem:[#allocation2 + $0x720] sm:$0xff]
    %v673 = vld [vmem:[#allocation2 + $0x728] sm:$0xff]
    %v674 = vld [vmem:[#allocation2 + $0x730] sm:$0xff]
    %v675 = vld [vmem:[#allocation2 + $0x738] sm:$0xff]
    %v676 = vld [vmem:[#allocation2 + $0x740] sm:$0xff]
    %v677 = vld [vmem:[#allocation2 + $0x748] sm:$0xff]
    %v678 = vld [vmem:[#allocation2 + $0x750] sm:$0xff]
    %v679 = vld [vmem:[#allocation2 + $0x758] sm:$0xff]
    %v680 = vld [vmem:[#allocation2 + $0x760] sm:$0xff]
    %v681 = vld [vmem:[#allocation2 + $0x768] sm:$0xff]
    %v682 = vld [vmem:[#allocation2 + $0x770] sm:$0xff]
    %v683 = vld [vmem:[#allocation2 + $0x778] sm:$0xff]
    %v684 = vld [vmem:[#allocation2 + $0x780] sm:$0xff]
    %v685 = vld [vmem:[#allocation2 + $0x788] sm:$0xff]
    %v686 = vld [vmem:[#allocation2 + $0x790] sm:$0xff]
    %v687 = vld [vmem:[#allocation2 + $0x798] sm:$0xff]
    %v688 = vld [vmem:[#allocation2 + $0x7a0] sm:$0xff]
    %v689 = vld [vmem:[#allocation2 + $0x7a8] sm:$0xff]
    %v690 = vld [vmem:[#allocation2 + $0x7b0] sm:$0xff]
    %v691 = vld [vmem:[#allocation2 + $0x7b8] sm:$0xff]
    %v692 = vld [vmem:[#allocation2 + $0x7c0] sm:$0xff]
    %v693 = vld [vmem:[#allocation2 + $0x7c8] sm:$0xff]
    %v694 = vld [vmem:[#allocation2 + $0x7d0] sm:$0xff]
    %v695 = vld [vmem:[#allocation2 + $0x7d8] sm:$0xff]
    %v696 = vld [vmem:[#allocation2 + $0x7e0] sm:$0xff]
    %v697 = vld [vmem:[#allocation2 + $0x7e8] sm:$0xff]
    %v698 = vld [vmem:[#allocation2 + $0x7f0] sm:$0xff]
    %v699 = vld [vmem:[#allocation2 + $0x7f8] sm:$0xff]
    %v700 = vld [vmem:[#allocation2 + $0x800] sm:$0xff]
    %v701 = vld [vmem:[#allocation2 + $0x808] sm:$0xff]
    %v702 = vld [vmem:[#allocation2 + $0x810] sm:$0xff]
    %v703 = vld [vmem:[#allocation2 + $0x818] sm:$0xff]
    %v704 = vld [vmem:[#allocation2 + $0x820] sm:$0xff]
    %v705 = vld [vmem:[#allocation2 + $0x828] sm:$0xff]
    %v706 = vld [vmem:[#allocation2 + $0x830] sm:$0xff]
    %v707 = vld [vmem:[#allocation2 + $0x838] sm:$0xff]
    %v708 = vld [vmem:[#allocation2 + $0x840] sm:$0xff]
    %v709 = vld [vmem:[#allocation2 + $0x848] sm:$0xff]
    %v710 = vld [vmem:[#allocation2 + $0x850] sm:$0xff]
    %v711 = vld [vmem:[#allocation2 + $0x858] sm:$0xff]
    %v712 = vld [vmem:[#allocation2 + $0x860] sm:$0xff]
    %v713 = vld [vmem:[#allocation2 + $0x868] sm:$0xff]
    %v714 = vld [vmem:[#allocation2 + $0x870] sm:$0xff]
    %v715 = vld [vmem:[#allocation2 + $0x878] sm:$0xff]
    %v716 = vld [vmem:[#allocation2 + $0x880] sm:$0xff]
    %v717 = vld [vmem:[#allocation2 + $0x888] sm:$0xff]
    %v718 = vld [vmem:[#allocation2 + $0x890] sm:$0xff]
    %v719 = vld [vmem:[#allocation2 + $0x898] sm:$0xff]
    %v720 = vld [vmem:[#allocation2 + $0x8a0] sm:$0xff]
    %v721 = vld [vmem:[#allocation2 + $0x8a8] sm:$0xff]
    %v722 = vld [vmem:[#allocation2 + $0x8b0] sm:$0xff]
    %v723 = vld [vmem:[#allocation2 + $0x8b8] sm:$0xff]
    %v724 = vld [vmem:[#allocation2 + $0x8c0] sm:$0xff]
    %v725 = vld [vmem:[#allocation2 + $0x8c8] sm:$0xff]
    %v726 = vld [vmem:[#allocation2 + $0x8d0] sm:$0xff]
    %v727 = vld [vmem:[#allocation2 + $0x8d8] sm:$0xff]
    %v728 = vld [vmem:[#allocation2 + $0x8e0] sm:$0xff]
    %v729 = vld [vmem:[#allocation2 + $0x8e8] sm:$0xff]
    %v730 = vld [vmem:[#allocation2 + $0x8f0] sm:$0xff]
    %v731 = vld [vmem:[#allocation2 + $0x8f8] sm:$0xff]
    %v732 = vld [vmem:[#allocation2 + $0x900] sm:$0xff]
    %v733 = vld [vmem:[#allocation2 + $0x908] sm:$0xff]
    %v734 = vld [vmem:[#allocation2 + $0x910] sm:$0xff]
    %v735 = vld [vmem:[#allocation2 + $0x918] sm:$0xff]
    %v736 = vld [vmem:[#allocation2 + $0x920] sm:$0xff]
    %v737 = vld [vmem:[#allocation2 + $0x928] sm:$0xff]
    %v738 = vld [vmem:[#allocation2 + $0x930] sm:$0xff]
    %v739 = vld [vmem:[#allocation2 + $0x938] sm:$0xff]
    %v740 = vld [vmem:[#allocation2 + $0x940] sm:$0xff]
    %v741 = vld [vmem:[#allocation2 + $0x948] sm:$0xff]
    %v742 = vld [vmem:[#allocation2 + $0x950] sm:$0xff]
    %v743 = vld [vmem:[#allocation2 + $0x958] sm:$0xff]
    %v744 = vld [vmem:[#allocation2 + $0x960] sm:$0xff]
    %v745 = vld [vmem:[#allocation2 + $0x968] sm:$0xff]
    %v746 = vld [vmem:[#allocation2 + $0x970] sm:$0xff]
    %v747 = vld [vmem:[#allocation2 + $0x978] sm:$0xff]
    %v748 = vld [vmem:[#allocation2 + $0x980] sm:$0xff]
    %v749 = vld [vmem:[#allocation2 + $0x988] sm:$0xff]
    %v750 = vld [vmem:[#allocation2 + $0x990] sm:$0xff]
    %v751 = vld [vmem:[#allocation2 + $0x998] sm:$0xff]
    %v752 = vld [vmem:[#allocation2 + $0x9a0] sm:$0xff]
    %v753 = vld [vmem:[#allocation2 + $0x9a8] sm:$0xff]
    %v754 = vld [vmem:[#allocation2 + $0x9b0] sm:$0xff]
    %v755 = vld [vmem:[#allocation2 + $0x9b8] sm:$0xff]
    %v756 = vld [vmem:[#allocation2 + $0x9c0] sm:$0xff]
    %v757 = vld [vmem:[#allocation2 + $0x9c8] sm:$0xff]
    %v758 = vld [vmem:[#allocation2 + $0x9d0] sm:$0xff]
    %v759 = vld [vmem:[#allocation2 + $0x9d8] sm:$0xff]
    %v760 = vld [vmem:[#allocation2 + $0x9e0] sm:$0xff]
    %v761 = vld [vmem:[#allocation2 + $0x9e8] sm:$0xff]
    %v762 = vld [vmem:[#allocation2 + $0x9f0] sm:$0xff]
    %v763 = vld [vmem:[#allocation2 + $0x9f8] sm:$0xff]
    %v764 = vld [vmem:[#allocation2 + $0xa00] sm:$0xff]
    %v765 = vld [vmem:[#allocation2 + $0xa08] sm:$0xff]
    %v766 = vld [vmem:[#allocation2 + $0xa10] sm:$0xff]
    %v767 = vld [vmem:[#allocation2 + $0xa18] sm:$0xff]
    %v768 = vld [vmem:[#allocation2 + $0xa20] sm:$0xff]
    %v769 = vld [vmem:[#allocation2 + $0xa28] sm:$0xff]
    %v770 = vld [vmem:[#allocation2 + $0xa30] sm:$0xff]
    %v771 = vld [vmem:[#allocation2 + $0xa38] sm:$0xff]
    %v772 = vld [vmem:[#allocation2 + $0xa40] sm:$0xff]
    %v773 = vld [vmem:[#allocation2 + $0xa48] sm:$0xff]
    %v774 = vld [vmem:[#allocation2 + $0xa50] sm:$0xff]
    %v775 = vld [vmem:[#allocation2 + $0xa58] sm:$0xff]
    %v776 = vld [vmem:[#allocation2 + $0xa60] sm:$0xff]
    %v777 = vld [vmem:[#allocation2 + $0xa68] sm:$0xff]
    %v778 = vld [vmem:[#allocation2 + $0xa70] sm:$0xff]
    %v779 = vld [vmem:[#allocation2 + $0xa78] sm:$0xff]
    %v780 = vld [vmem:[#allocation2 + $0xa80] sm:$0xff]
    %v781 = vld [vmem:[#allocation2 + $0xa88] sm:$0xff]
    %v782 = vld [vmem:[#allocation2 + $0xa90] sm:$0xff]
    %v783 = vld [vmem:[#allocation2 + $0xa98] sm:$0xff]
    %v784 = vld [vmem:[#allocation2 + $0xaa0] sm:$0xff]
    %v785 = vld [vmem:[#allocation2 + $0xaa8] sm:$0xff]
    %v786 = vld [vmem:[#allocation2 + $0xab0] sm:$0xff]
    %v787 = vld [vmem:[#allocation2 + $0xab8] sm:$0xff]
    %v788 = vld [vmem:[#allocation2 + $0xac0] sm:$0xff]
    %v789 = vld [vmem:[#allocation2 + $0xac8] sm:$0xff]
    %v790 = vld [vmem:[#allocation2 + $0xad0] sm:$0xff]
    %v791 = vld [vmem:[#allocation2 + $0xad8] sm:$0xff]
    %v792 = vld [vmem:[#allocation2 + $0xae0] sm:$0xff]
    %v793 = vld [vmem:[#allocation2 + $0xae8] sm:$0xff]
    %v794 = vld [vmem:[#allocation2 + $0xaf0] sm:$0xff]
    %v795 = vld [vmem:[#allocation2 + $0xaf8] sm:$0xff]
    %v796 = vld [vmem:[#allocation2 + $0xb00] sm:$0xff]
    %v797 = vld [vmem:[#allocation2 + $0xb08] sm:$0xff]
    %v798 = vld [vmem:[#allocation2 + $0xb10] sm:$0xff]
    %v799 = vld [vmem:[#allocation2 + $0xb18] sm:$0xff]
    %v800 = vld [vmem:[#allocation2 + $0xb20] sm:$0xff]
    %v801 = vld [vmem:[#allocation2 + $0xb28] sm:$0xff]
    %v802 = vld [vmem:[#allocation2 + $0xb30] sm:$0xff]
    %v803 = vld [vmem:[#allocation2 + $0xb38] sm:$0xff]
    %v804 = vld [vmem:[#allocation2 + $0xb40] sm:$0xff]
    %v805 = vld [vmem:[#allocation2 + $0xb48] sm:$0xff]
    %v806 = vld [vmem:[#allocation2 + $0xb50] sm:$0xff]
    %v807 = vld [vmem:[#allocation2 + $0xb58] sm:$0xff]
    %v808 = vld [vmem:[#allocation2 + $0xb60] sm:$0xff]
    %v809 = vld [vmem:[#allocation2 + $0xb68] sm:$0xff]
    %v810 = vld [vmem:[#allocation2 + $0xb70] sm:$0xff]
    %v811 = vld [vmem:[#allocation2 + $0xb78] sm:$0xff]
    %v812 = vld [vmem:[#allocation2 + $0xb80] sm:$0xff]
    %v813 = vld [vmem:[#allocation2 + $0xb88] sm:$0xff]
    %v814 = vld [vmem:[#allocation2 + $0xb90] sm:$0xff]
    %v815 = vld [vmem:[#allocation2 + $0xb98] sm:$0xff]
    %v816 = vld [vmem:[#allocation2 + $0xba0] sm:$0xff]
    %v817 = vld [vmem:[#allocation2 + $0xba8] sm:$0xff]
    %v818 = vld [vmem:[#allocation2 + $0xbb0] sm:$0xff]
    %v819 = vld [vmem:[#allocation2 + $0xbb8] sm:$0xff]
    %v820 = vld [vmem:[#allocation2 + $0xbc0] sm:$0xff]
    %v821 = vld [vmem:[#allocation2 + $0xbc8] sm:$0xff]
    %v822 = vld [vmem:[#allocation2 + $0xbd0] sm:$0xff]
    %v823 = vld [vmem:[#allocation2 + $0xbd8] sm:$0xff]
    %v824 = vld [vmem:[#allocation2 + $0xbe0] sm:$0xff]
    %v825 = vld [vmem:[#allocation2 + $0xbe8] sm:$0xff]
    %v826 = vld [vmem:[#allocation2 + $0xbf0] sm:$0xff]
    %v827 = vld [vmem:[#allocation2 + $0xbf8] sm:$0xff]
    %v828 = vld [vmem:[#allocation2 + $0xc00] sm:$0xff]
    %v829 = vld [vmem:[#allocation2 + $0xc08] sm:$0xff]
    %v830 = vld [vmem:[#allocation2 + $0xc10] sm:$0xff]
    %v831 = vld [vmem:[#allocation2 + $0xc18] sm:$0xff]
    %v832 = vld [vmem:[#allocation2 + $0xc20] sm:$0xff]
    %v833 = vld [vmem:[#allocation2 + $0xc28] sm:$0xff]
    %v834 = vld [vmem:[#allocation2 + $0xc30] sm:$0xff]
    %v835 = vld [vmem:[#allocation2 + $0xc38] sm:$0xff]
    %v836 = vld [vmem:[#allocation2 + $0xc40] sm:$0xff]
    %v837 = vld [vmem:[#allocation2 + $0xc48] sm:$0xff]
    %v838 = vld [vmem:[#allocation2 + $0xc50] sm:$0xff]
    %v839 = vld [vmem:[#allocation2 + $0xc58] sm:$0xff]
    %v840 = vld [vmem:[#allocation2 + $0xc60] sm:$0xff]
    %v841 = vld [vmem:[#allocation2 + $0xc68] sm:$0xff]
    %v842 = vld [vmem:[#allocation2 + $0xc70] sm:$0xff]
    %v843 = vld [vmem:[#allocation2 + $0xc78] sm:$0xff]
    %v844 = vsub.f32 %v44, %v444
    %v845 = vsub.f32 %v45, %v445
    %v846 = vsub.f32 %v46, %v446
    %v847 = vsub.f32 %v47, %v447
    %v848 = vsub.f32 %v48, %v448
    %v849 = vsub.f32 %v49, %v449
    %v850 = vsub.f32 %v50, %v450
    %v851 = vsub.f32 %v51, %v451
    %v852 = vsub.f32 %v52, %v452
    %v853 = vsub.f32 %v53, %v453
    %v854 = vsub.f32 %v54, %v454
    %v855 = vsub.f32 %v55, %v455
    %v856 = vsub.f32 %v56, %v456
    %v857 = vsub.f32 %v57, %v457
    %v858 = vsub.f32 %v58, %v458
    %v859 = vsub.f32 %v59, %v459
    %v860 = vsub.f32 %v60, %v460
    %v861 = vsub.f32 %v61, %v461
    %v862 = vsub.f32 %v62, %v462
    %v863 = vsub.f32 %v63, %v463
    %v864 = vsub.f32 %v64, %v464
    %v865 = vsub.f32 %v65, %v465
    %v866 = vsub.f32 %v66, %v466
    %v867 = vsub.f32 %v67, %v467
    %v868 = vsub.f32 %v68, %v468
    %v869 = vsub.f32 %v69, %v469
    %v870 = vsub.f32 %v70, %v470
    %v871 = vsub.f32 %v71, %v471
    %v872 = vsub.f32 %v72, %v472
    %v873 = vsub.f32 %v73, %v473
    %v874 = vsub.f32 %v74, %v474
    %v875 = vsub.f32 %v75, %v475
    %v876 = vsub.f32 %v76, %v476
    %v877 = vsub.f32 %v77, %v477
    %v878 = vsub.f32 %v78, %v478
    %v879 = vsub.f32 %v79, %v479
    %v880 = vsub.f32 %v80, %v480
    %v881 = vsub.f32 %v81, %v481
    %v882 = vsub.f32 %v82, %v482
    %v883 = vsub.f32 %v83, %v483
    %v884 = vsub.f32 %v84, %v484
    %v885 = vsub.f32 %v85, %v485
    %v886 = vsub.f32 %v86, %v486
    %v887 = vsub.f32 %v87, %v487
    %v888 = vsub.f32 %v88, %v488
    %v889 = vsub.f32 %v89, %v489
    %v890 = vsub.f32 %v90, %v490
    %v891 = vsub.f32 %v91, %v491
    %v892 = vsub.f32 %v92, %v492
    %v893 = vsub.f32 %v93, %v493
    %v894 = vsub.f32 %v94, %v494
    %v895 = vsub.f32 %v95, %v495
    %v896 = vsub.f32 %v96, %v496
    %v897 = vsub.f32 %v97, %v497
    %v898 = vsub.f32 %v98, %v498
    %v899 = vsub.f32 %v99, %v499
    %v900 = vsub.f32 %v100, %v500
    %v901 = vsub.f32 %v101, %v501
    %v902 = vsub.f32 %v102, %v502
    %v903 = vsub.f32 %v103, %v503
    %v904 = vsub.f32 %v104, %v504
    %v905 = vsub.f32 %v105, %v505
    %v906 = vsub.f32 %v106, %v506
    %v907 = vsub.f32 %v107, %v507
    %v908 = vsub.f32 %v108, %v508
    %v909 = vsub.f32 %v109, %v509
    %v910 = vsub.f32 %v110, %v510
    %v911 = vsub.f32 %v111, %v511
    %v912 = vsub.f32 %v112, %v512
    %v913 = vsub.f32 %v113, %v513
    %v914 = vsub.f32 %v114, %v514
    %v915 = vsub.f32 %v115, %v515
    %v916 = vsub.f32 %v116, %v516
    %v917 = vsub.f32 %v117, %v517
    %v918 = vsub.f32 %v118, %v518
    %v919 = vsub.f32 %v119, %v519
    %v920 = vsub.f32 %v120, %v520
    %v921 = vsub.f32 %v121, %v521
    %v922 = vsub.f32 %v122, %v522
    %v923 = vsub.f32 %v123, %v523
    %v924 = vsub.f32 %v124, %v524
    %v925 = vsub.f32 %v125, %v525
    %v926 = vsub.f32 %v126, %v526
    %v927 = vsub.f32 %v127, %v527
    %v928 = vsub.f32 %v128, %v528
    %v929 = vsub.f32 %v129, %v529
    %v930 = vsub.f32 %v130, %v530
    %v931 = vsub.f32 %v131, %v531
    %v932 = vsub.f32 %v132, %v532
    %v933 = vsub.f32 %v133, %v533
    %v934 = vsub.f32 %v134, %v534
    %v935 = vsub.f32 %v135, %v535
    %v936 = vsub.f32 %v136, %v536
    %v937 = vsub.f32 %v137, %v537
    %v938 = vsub.f32 %v138, %v538
    %v939 = vsub.f32 %v139, %v539
    %v940 = vsub.f32 %v140, %v540
    %v941 = vsub.f32 %v141, %v541
    %v942 = vsub.f32 %v142, %v542
    %v943 = vsub.f32 %v143, %v543
    %v944 = vsub.f32 %v144, %v544
    %v945 = vsub.f32 %v145, %v545
    %v946 = vsub.f32 %v146, %v546
    %v947 = vsub.f32 %v147, %v547
    %v948 = vsub.f32 %v148, %v548
    %v949 = vsub.f32 %v149, %v549
    %v950 = vsub.f32 %v150, %v550
    %v951 = vsub.f32 %v151, %v551
    %v952 = vsub.f32 %v152, %v552
    %v953 = vsub.f32 %v153, %v553
    %v954 = vsub.f32 %v154, %v554
    %v955 = vsub.f32 %v155, %v555
    %v956 = vsub.f32 %v156, %v556
    %v957 = vsub.f32 %v157, %v557
    %v958 = vsub.f32 %v158, %v558
    %v959 = vsub.f32 %v159, %v559
    %v960 = vsub.f32 %v160, %v560
    %v961 = vsub.f32 %v161, %v561
    %v962 = vsub.f32 %v162, %v562
    %v963 = vsub.f32 %v163, %v563
    %v964 = vsub.f32 %v164, %v564
    %v965 = vsub.f32 %v165, %v565
    %v966 = vsub.f32 %v166, %v566
    %v967 = vsub.f32 %v167, %v567
    %v968 = vsub.f32 %v168, %v568
    %v969 = vsub.f32 %v169, %v569
    %v970 = vsub.f32 %v170, %v570
    %v971 = vsub.f32 %v171, %v571
    %v972 = vsub.f32 %v172, %v572
    %v973 = vsub.f32 %v173, %v573
    %v974 = vsub.f32 %v174, %v574
    %v975 = vsub.f32 %v175, %v575
    %v976 = vsub.f32 %v176, %v576
    %v977 = vsub.f32 %v177, %v577
    %v978 = vsub.f32 %v178, %v578
    %v979 = vsub.f32 %v179, %v579
    %v980 = vsub.f32 %v180, %v580
    %v981 = vsub.f32 %v181, %v581
    %v982 = vsub.f32 %v182, %v582
    %v983 = vsub.f32 %v183, %v583
    %v984 = vsub.f32 %v184, %v584
    %v985 = vsub.f32 %v185, %v585
    %v986 = vsub.f32 %v186, %v586
    %v987 = vsub.f32 %v187, %v587
    %v988 = vsub.f32 %v188, %v588
    %v989 = vsub.f32 %v189, %v589
    %v990 = vsub.f32 %v190, %v590
    %v991 = vsub.f32 %v191, %v591
    %v992 = vsub.f32 %v192, %v592
    %v993 = vsub.f32 %v193, %v593
    %v994 = vsub.f32 %v194, %v594
    %v995 = vsub.f32 %v195, %v595
    %v996 = vsub.f32 %v196, %v596
    %v997 = vsub.f32 %v197, %v597
    %v998 = vsub.f32 %v198, %v598
    %v999 = vsub.f32 %v199, %v599
    %v1000 = vsub.f32 %v200, %v600
    %v1001 = vsub.f32 %v201, %v601
    %v1002 = vsub.f32 %v202, %v602
    %v1003 = vsub.f32 %v203, %v603
    %v1004 = vsub.f32 %v204, %v604
    %v1005 = vsub.f32 %v205, %v605
    %v1006 = vsub.f32 %v206, %v606
    %v1007 = vsub.f32 %v207, %v607
    %v1008 = vsub.f32 %v208, %v608
    %v1009 = vsub.f32 %v209, %v609
    %v1010 = vsub.f32 %v210, %v610
    %v1011 = vsub.f32 %v211, %v611
    %v1012 = vsub.f32 %v212, %v612
    %v1013 = vsub.f32 %v213, %v613
    %v1014 = vsub.f32 %v214, %v614
    %v1015 = vsub.f32 %v215, %v615
    %v1016 = vsub.f32 %v216, %v616
    %v1017 = vsub.f32 %v217, %v617
    %v1018 = vsub.f32 %v218, %v618
    %v1019 = vsub.f32 %v219, %v619
    %v1020 = vsub.f32 %v220, %v620
    %v1021 = vsub.f32 %v221, %v621
    %v1022 = vsub.f32 %v222, %v622
    %v1023 = vsub.f32 %v223, %v623
    %v1024 = vsub.f32 %v224, %v624
    %v1025 = vsub.f32 %v225, %v625
    %v1026 = vsub.f32 %v226, %v626
    %v1027 = vsub.f32 %v227, %v627
    %v1028 = vsub.f32 %v228, %v628
    %v1029 = vsub.f32 %v229, %v629
    %v1030 = vsub.f32 %v230, %v630
    %v1031 = vsub.f32 %v231, %v631
    %v1032 = vsub.f32 %v232, %v632
    %v1033 = vsub.f32 %v233, %v633
    %v1034 = vsub.f32 %v234, %v634
    %v1035 = vsub.f32 %v235, %v635
    %v1036 = vsub.f32 %v236, %v636
    %v1037 = vsub.f32 %v237, %v637
    %v1038 = vsub.f32 %v238, %v638
    %v1039 = vsub.f32 %v239, %v639
    %v1040 = vsub.f32 %v240, %v640
    %v1041 = vsub.f32 %v241, %v641
    %v1042 = vsub.f32 %v242, %v642
    %v1043 = vsub.f32 %v243, %v643
    %v1044 = vsub.f32 %v244, %v644
    %v1045 = vsub.f32 %v245, %v645
    %v1046 = vsub.f32 %v246, %v646
    %v1047 = vsub.f32 %v247, %v647
    %v1048 = vsub.f32 %v248, %v648
    %v1049 = vsub.f32 %v249, %v649
    %v1050 = vsub.f32 %v250, %v650
    %v1051 = vsub.f32 %v251, %v651
    %v1052 = vsub.f32 %v252, %v652
    %v1053 = vsub.f32 %v253, %v653
    %v1054 = vsub.f32 %v254, %v654
    %v1055 = vsub.f32 %v255, %v655
    %v1056 = vsub.f32 %v256, %v656
    %v1057 = vsub.f32 %v257, %v657
    %v1058 = vsub.f32 %v258, %v658
    %v1059 = vsub.f32 %v259, %v659
    %v1060 = vsub.f32 %v260, %v660
    %v1061 = vsub.f32 %v261, %v661
    %v1062 = vsub.f32 %v262, %v662
    %v1063 = vsub.f32 %v263, %v663
    %v1064 = vsub.f32 %v264, %v664
    %v1065 = vsub.f32 %v265, %v665
    %v1066 = vsub.f32 %v266, %v666
    %v1067 = vsub.f32 %v267, %v667
    %v1068 = vsub.f32 %v268, %v668
    %v1069 = vsub.f32 %v269, %v669
    %v1070 = vsub.f32 %v270, %v670
    %v1071 = vsub.f32 %v271, %v671
    %v1072 = vsub.f32 %v272, %v672
    %v1073 = vsub.f32 %v273, %v673
    %v1074 = vsub.f32 %v274, %v674
    %v1075 = vsub.f32 %v275, %v675
    %v1076 = vsub.f32 %v276, %v676
    %v1077 = vsub.f32 %v277, %v677
    %v1078 = vsub.f32 %v278, %v678
    %v1079 = vsub.f32 %v279, %v679
    %v1080 = vsub.f32 %v280, %v680
    %v1081 = vsub.f32 %v281, %v681
    %v1082 = vsub.f32 %v282, %v682
    %v1083 = vsub.f32 %v283, %v683
    %v1084 = vsub.f32 %v284, %v684
    %v1085 = vsub.f32 %v285, %v685
    %v1086 = vsub.f32 %v286, %v686
    %v1087 = vsub.f32 %v287, %v687
    %v1088 = vsub.f32 %v288, %v688
    %v1089 = vsub.f32 %v289, %v689
    %v1090 = vsub.f32 %v290, %v690
    %v1091 = vsub.f32 %v291, %v691
    %v1092 = vsub.f32 %v292, %v692
    %v1093 = vsub.f32 %v293, %v693
    %v1094 = vsub.f32 %v294, %v694
    %v1095 = vsub.f32 %v295, %v695
    %v1096 = vsub.f32 %v296, %v696
    %v1097 = vsub.f32 %v297, %v697
    %v1098 = vsub.f32 %v298, %v698
    %v1099 = vsub.f32 %v299, %v699
    %v1100 = vsub.f32 %v300, %v700
    %v1101 = vsub.f32 %v301, %v701
    %v1102 = vsub.f32 %v302, %v702
    %v1103 = vsub.f32 %v303, %v703
    %v1104 = vsub.f32 %v304, %v704
    %v1105 = vsub.f32 %v305, %v705
    %v1106 = vsub.f32 %v306, %v706
    %v1107 = vsub.f32 %v307, %v707
    %v1108 = vsub.f32 %v308, %v708
    %v1109 = vsub.f32 %v309, %v709
    %v1110 = vsub.f32 %v310, %v710
    %v1111 = vsub.f32 %v311, %v711
    %v1112 = vsub.f32 %v312, %v712
    %v1113 = vsub.f32 %v313, %v713
    %v1114 = vsub.f32 %v314, %v714
    %v1115 = vsub.f32 %v315, %v715
    %v1116 = vsub.f32 %v316, %v716
    %v1117 = vsub.f32 %v317, %v717
    %v1118 = vsub.f32 %v318, %v718
    %v1119 = vsub.f32 %v319, %v719
    %v1120 = vsub.f32 %v320, %v720
    %v1121 = vsub.f32 %v321, %v721
    %v1122 = vsub.f32 %v322, %v722
    %v1123 = vsub.f32 %v323, %v723
    %v1124 = vsub.f32 %v324, %v724
    %v1125 = vsub.f32 %v325, %v725
    %v1126 = vsub.f32 %v326, %v726
    %v1127 = vsub.f32 %v327, %v727
    %v1128 = vsub.f32 %v328, %v728
    %v1129 = vsub.f32 %v329, %v729
    %v1130 = vsub.f32 %v330, %v730
    %v1131 = vsub.f32 %v331, %v731
    %v1132 = vsub.f32 %v332, %v732
    %v1133 = vsub.f32 %v333, %v733
    %v1134 = vsub.f32 %v334, %v734
    %v1135 = vsub.f32 %v335, %v735
    %v1136 = vsub.f32 %v336, %v736
    %v1137 = vsub.f32 %v337, %v737
    %v1138 = vsub.f32 %v338, %v738
    %v1139 = vsub.f32 %v339, %v739
    %v1140 = vsub.f32 %v340, %v740
    %v1141 = vsub.f32 %v341, %v741
    %v1142 = vsub.f32 %v342, %v742
    %v1143 = vsub.f32 %v343, %v743
    %v1144 = vsub.f32 %v344, %v744
    %v1145 = vsub.f32 %v345, %v745
    %v1146 = vsub.f32 %v346, %v746
    %v1147 = vsub.f32 %v347, %v747
    %v1148 = vsub.f32 %v348, %v748
    %v1149 = vsub.f32 %v349, %v749
    %v1150 = vsub.f32 %v350, %v750
    %v1151 = vsub.f32 %v351, %v751
    %v1152 = vsub.f32 %v352, %v752
    %v1153 = vsub.f32 %v353, %v753
    %v1154 = vsub.f32 %v354, %v754
    %v1155 = vsub.f32 %v355, %v755
    %v1156 = vsub.f32 %v356, %v756
    %v1157 = vsub.f32 %v357, %v757
    %v1158 = vsub.f32 %v358, %v758
    %v1159 = vsub.f32 %v359, %v759
    %v1160 = vsub.f32 %v360, %v760
    %v1161 = vsub.f32 %v361, %v761
    %v1162 = vsub.f32 %v362, %v762
    %v1163 = vsub.f32 %v363, %v763
    %v1164 = vsub.f32 %v364, %v764
    %v1165 = vsub.f32 %v365, %v765
    %v1166 = vsub.f32 %v366, %v766
    %v1167 = vsub.f32 %v367, %v767
    %v1168 = vsub.f32 %v368, %v768
    %v1169 = vsub.f32 %v369, %v769
    %v1170 = vsub.f32 %v370, %v770
    %v1171 = vsub.f32 %v371, %v771
    %v1172 = vsub.f32 %v372, %v772
    %v1173 = vsub.f32 %v373, %v773
    %v1174 = vsub.f32 %v374, %v774
    %v1175 = vsub.f32 %v375, %v775
    %v1176 = vsub.f32 %v376, %v776
    %v1177 = vsub.f32 %v377, %v777
    %v1178 = vsub.f32 %v378, %v778
    %v1179 = vsub.f32 %v379, %v779
    %v1180 = vsub.f32 %v380, %v780
    %v1181 = vsub.f32 %v381, %v781
    %v1182 = vsub.f32 %v382, %v782
    %v1183 = vsub.f32 %v383, %v783
    %v1184 = vsub.f32 %v384, %v784
    %v1185 = vsub.f32 %v385, %v785
    %v1186 = vsub.f32 %v386, %v786
    %v1187 = vsub.f32 %v387, %v787
    %v1188 = vsub.f32 %v388, %v788
    %v1189 = vsub.f32 %v389, %v789
    %v1190 = vsub.f32 %v390, %v790
    %v1191 = vsub.f32 %v391, %v791
    %v1192 = vsub.f32 %v392, %v792
    %v1193 = vsub.f32 %v393, %v793
    %v1194 = vsub.f32 %v394, %v794
    %v1195 = vsub.f32 %v395, %v795
    %v1196 = vsub.f32 %v396, %v796
    %v1197 = vsub.f32 %v397, %v797
    %v1198 = vsub.f32 %v398, %v798
    %v1199 = vsub.f32 %v399, %v799
    %v1200 = vsub.f32 %v400, %v800
    %v1201 = vsub.f32 %v401, %v801
    %v1202 = vsub.f32 %v402, %v802
    %v1203 = vsub.f32 %v403, %v803
    %v1204 = vsub.f32 %v404, %v804
    %v1205 = vsub.f32 %v405, %v805
    %v1206 = vsub.f32 %v406, %v806
    %v1207 = vsub.f32 %v407, %v807
    %v1208 = vsub.f32 %v408, %v808
    %v1209 = vsub.f32 %v409, %v809
    %v1210 = vsub.f32 %v410, %v810
    %v1211 = vsub.f32 %v411, %v811
    %v1212 = vsub.f32 %v412, %v812
    %v1213 = vsub.f32 %v413, %v813
    %v1214 = vsub.f32 %v414, %v814
    %v1215 = vsub.f32 %v415, %v815
    %v1216 = vsub.f32 %v416, %v816
    %v1217 = vsub.f32 %v417, %v817
    %v1218 = vsub.f32 %v418, %v818
    %v1219 = vsub.f32 %v419, %v819
    %v1220 = vsub.f32 %v420, %v820
    %v1221 = vsub.f32 %v421, %v821
    %v1222 = vsub.f32 %v422, %v822
    %v1223 = vsub.f32 %v423, %v823
    %v1224 = vsub.f32 %v424, %v824
    %v1225 = vsub.f32 %v425, %v825
    %v1226 = vsub.f32 %v426, %v826
    %v1227 = vsub.f32 %v427, %v827
    %v1228 = vsub.f32 %v428, %v828
    %v1229 = vsub.f32 %v429, %v829
    %v1230 = vsub.f32 %v430, %v830
    %v1231 = vsub.f32 %v431, %v831
    %v1232 = vsub.f32 %v432, %v832
    %v1233 = vsub.f32 %v433, %v833
    %v1234 = vsub.f32 %v434, %v834
    %v1235 = vsub.f32 %v435, %v835
    %v1236 = vsub.f32 %v436, %v836
    %v1237 = vsub.f32 %v437, %v837
    %v1238 = vsub.f32 %v438, %v838
    %v1239 = vsub.f32 %v439, %v839
    %v1240 = vsub.f32 %v440, %v840
    %v1241 = vsub.f32 %v441, %v841
    %v1242 = vsub.f32 %v442, %v842
    %v1243 = vsub.f32 %v443, %v843
    %v1244 = vadd.f32 %v844, 2.0
    %v1245 = vadd.f32 %v845, 2.0
    %v1246 = vadd.f32 %v846, 2.0
    %v1247 = vadd.f32 %v847, 2.0
    %v1248 = vadd.f32 %v848, 2.0
    %v1249 = vadd.f32 %v849, 2.0
    %v1250 = vadd.f32 %v850, 2.0
    %v1251 = vadd.f32 %v851, 2.0
    %v1252 = vadd.f32 %v852, 2.0
    %v1253 = vadd.f32 %v853, 2.0
    %v1254 = vadd.f32 %v854, 2.0
    %v1255 = vadd.f32 %v855, 2.0
    %v1256 = vadd.f32 %v856, 2.0
    %v1257 = vadd.f32 %v857, 2.0
    %v1258 = vadd.f32 %v858, 2.0
    %v1259 = vadd.f32 %v859, 2.0
    %v1260 = vadd.f32 %v860, 2.0
    %v1261 = vadd.f32 %v861, 2.0
    %v1262 = vadd.f32 %v862, 2.0
    %v1263 = vadd.f32 %v863, 2.0
    %v1264 = vadd.f32 %v864, 2.0
    %v1265 = vadd.f32 %v865, 2.0
    %v1266 = vadd.f32 %v866, 2.0
    %v1267 = vadd.f32 %v867, 2.0
    %v1268 = vadd.f32 %v868, 2.0
    %v1269 = vadd.f32 %v869, 2.0
    %v1270 = vadd.f32 %v870, 2.0
    %v1271 = vadd.f32 %v871, 2.0
    %v1272 = vadd.f32 %v872, 2.0
    %v1273 = vadd.f32 %v873, 2.0
    %v1274 = vadd.f32 %v874, 2.0
    %v1275 = vadd.f32 %v875, 2.0
    %v1276 = vadd.f32 %v876, 2.0
    %v1277 = vadd.f32 %v877, 2.0
    %v1278 = vadd.f32 %v878, 2.0
    %v1279 = vadd.f32 %v879, 2.0
    %v1280 = vadd.f32 %v880, 2.0
    %v1281 = vadd.f32 %v881, 2.0
    %v1282 = vadd.f32 %v882, 2.0
    %v1283 = vadd.f32 %v883, 2.0
    %v1284 = vadd.f32 %v884, 2.0
    %v1285 = vadd.f32 %v885, 2.0
    %v1286 = vadd.f32 %v886, 2.0
    %v1287 = vadd.f32 %v887, 2.0
    %v1288 = vadd.f32 %v888, 2.0
    %v1289 = vadd.f32 %v889, 2.0
    %v1290 = vadd.f32 %v890, 2.0
    %v1291 = vadd.f32 %v891, 2.0
    %v1292 = vadd.f32 %v892, 2.0
    %v1293 = vadd.f32 %v893, 2.0
    %v1294 = vadd.f32 %v894, 2.0
    %v1295 = vadd.f32 %v895, 2.0
    %v1296 = vadd.f32 %v896, 2.0
    %v1297 = vadd.f32 %v897, 2.0
    %v1298 = vadd.f32 %v898, 2.0
    %v1299 = vadd.f32 %v899, 2.0
    %v1300 = vadd.f32 %v900, 2.0
    %v1301 = vadd.f32 %v901, 2.0
    %v1302 = vadd.f32 %v902, 2.0
    %v1303 = vadd.f32 %v903, 2.0
    %v1304 = vadd.f32 %v904, 2.0
    %v1305 = vadd.f32 %v905, 2.0
    %v1306 = vadd.f32 %v906, 2.0
    %v1307 = vadd.f32 %v907, 2.0
    %v1308 = vadd.f32 %v908, 2.0
    %v1309 = vadd.f32 %v909, 2.0
    %v1310 = vadd.f32 %v910, 2.0
    %v1311 = vadd.f32 %v911, 2.0
    %v1312 = vadd.f32 %v912, 2.0
    %v1313 = vadd.f32 %v913, 2.0
    %v1314 = vadd.f32 %v914, 2.0
    %v1315 = vadd.f32 %v915, 2.0
    %v1316 = vadd.f32 %v916, 2.0
    %v1317 = vadd.f32 %v917, 2.0
    %v1318 = vadd.f32 %v918, 2.0
    %v1319 = vadd.f32 %v919, 2.0
    %v1320 = vadd.f32 %v920, 2.0
    %v1321 = vadd.f32 %v921, 2.0
    %v1322 = vadd.f32 %v922, 2.0
    %v1323 = vadd.f32 %v923, 2.0
    %v1324 = vadd.f32 %v924, 2.0
    %v1325 = vadd.f32 %v925, 2.0
    %v1326 = vadd.f32 %v926, 2.0
    %v1327 = vadd.f32 %v927, 2.0
    %v1328 = vadd.f32 %v928, 2.0
    %v1329 = vadd.f32 %v929, 2.0
    %v1330 = vadd.f32 %v930, 2.0
    %v1331 = vadd.f32 %v931, 2.0
    %v1332 = vadd.f32 %v932, 2.0
    %v1333 = vadd.f32 %v933, 2.0
    %v1334 = vadd.f32 %v934, 2.0
    %v1335 = vadd.f32 %v935, 2.0
    %v1336 = vadd.f32 %v936, 2.0
    %v1337 = vadd.f32 %v937, 2.0
    %v1338 = vadd.f32 %v938, 2.0
    %v1339 = vadd.f32 %v939, 2.0
    %v1340 = vadd.f32 %v940, 2.0
    %v1341 = vadd.f32 %v941, 2.0
    %v1342 = vadd.f32 %v942, 2.0
    %v1343 = vadd.f32 %v943, 2.0
    %v1344 = vadd.f32 %v944, 2.0
    %v1345 = vadd.f32 %v945, 2.0
    %v1346 = vadd.f32 %v946, 2.0
    %v1347 = vadd.f32 %v947, 2.0
    %v1348 = vadd.f32 %v948, 2.0
    %v1349 = vadd.f32 %v949, 2.0
    %v1350 = vadd.f32 %v950, 2.0
    %v1351 = vadd.f32 %v951, 2.0
    %v1352 = vadd.f32 %v952, 2.0
    %v1353 = vadd.f32 %v953, 2.0
    %v1354 = vadd.f32 %v954, 2.0
    %v1355 = vadd.f32 %v955, 2.0
    %v1356 = vadd.f32 %v956, 2.0
    %v1357 = vadd.f32 %v957, 2.0
    %v1358 = vadd.f32 %v958, 2.0
    %v1359 = vadd.f32 %v959, 2.0
    %v1360 = vadd.f32 %v960, 2.0
    %v1361 = vadd.f32 %v961, 2.0
    %v1362 = vadd.f32 %v962, 2.0
    %v1363 = vadd.f32 %v963, 2.0
    %v1364 = vadd.f32 %v964, 2.0
    %v1365 = vadd.f32 %v965, 2.0
    %v1366 = vadd.f32 %v966, 2.0
    %v1367 = vadd.f32 %v967, 2.0
    %v1368 = vadd.f32 %v968, 2.0
    %v1369 = vadd.f32 %v969, 2.0
    %v1370 = vadd.f32 %v970, 2.0
    %v1371 = vadd.f32 %v971, 2.0
    %v1372 = vadd.f32 %v972, 2.0
    %v1373 = vadd.f32 %v973, 2.0
    %v1374 = vadd.f32 %v974, 2.0
    %v1375 = vadd.f32 %v975, 2.0
    %v1376 = vadd.f32 %v976, 2.0
    %v1377 = vadd.f32 %v977, 2.0
    %v1378 = vadd.f32 %v978, 2.0
    %v1379 = vadd.f32 %v979, 2.0
    %v1380 = vadd.f32 %v980, 2.0
    %v1381 = vadd.f32 %v981, 2.0
    %v1382 = vadd.f32 %v982, 2.0
    %v1383 = vadd.f32 %v983, 2.0
    %v1384 = vadd.f32 %v984, 2.0
    %v1385 = vadd.f32 %v985, 2.0
    %v1386 = vadd.f32 %v986, 2.0
    %v1387 = vadd.f32 %v987, 2.0
    %v1388 = vadd.f32 %v988, 2.0
    %v1389 = vadd.f32 %v989, 2.0
    %v1390 = vadd.f32 %v990, 2.0
    %v1391 = vadd.f32 %v991, 2.0
    %v1392 = vadd.f32 %v992, 2.0
    %v1393 = vadd.f32 %v993, 2.0
    %v1394 = vadd.f32 %v994, 2.0
    %v1395 = vadd.f32 %v995, 2.0
    %v1396 = vadd.f32 %v996, 2.0
    %v1397 = vadd.f32 %v997, 2.0
    %v1398 = vadd.f32 %v998, 2.0
    %v1399 = vadd.f32 %v999, 2.0
    %v1400 = vadd.f32 %v1000, 2.0
    %v1401 = vadd.f32 %v1001, 2.0
    %v1402 = vadd.f32 %v1002, 2.0
    %v1403 = vadd.f32 %v1003, 2.0
    %v1404 = vadd.f32 %v1004, 2.0
    %v1405 = vadd.f32 %v1005, 2.0
    %v1406 = vadd.f32 %v1006, 2.0
    %v1407 = vadd.f32 %v1007, 2.0
    %v1408 = vadd.f32 %v1008, 2.0
    %v1409 = vadd.f32 %v1009, 2.0
    %v1410 = vadd.f32 %v1010, 2.0
    %v1411 = vadd.f32 %v1011, 2.0
    %v1412 = vadd.f32 %v1012, 2.0
    %v1413 = vadd.f32 %v1013, 2.0
    %v1414 = vadd.f32 %v1014, 2.0
    %v1415 = vadd.f32 %v1015, 2.0
    %v1416 = vadd.f32 %v1016, 2.0
    %v1417 = vadd.f32 %v1017, 2.0
    %v1418 = vadd.f32 %v1018, 2.0
    %v1419 = vadd.f32 %v1019, 2.0
    %v1420 = vadd.f32 %v1020, 2.0
    %v1421 = vadd.f32 %v1021, 2.0
    %v1422 = vadd.f32 %v1022, 2.0
    %v1423 = vadd.f32 %v1023, 2.0
    %v1424 = vadd.f32 %v1024, 2.0
    %v1425 = vadd.f32 %v1025, 2.0
    %v1426 = vadd.f32 %v1026, 2.0
    %v1427 = vadd.f32 %v1027, 2.0
    %v1428 = vadd.f32 %v1028, 2.0
    %v1429 = vadd.f32 %v1029, 2.0
    %v1430 = vadd.f32 %v1030, 2.0
    %v1431 = vadd.f32 %v1031, 2.0
    %v1432 = vadd.f32 %v1032, 2.0
    %v1433 = vadd.f32 %v1033, 2.0
    %v1434 = vadd.f32 %v1034, 2.0
    %v1435 = vadd.f32 %v1035, 2.0
    %v1436 = vadd.f32 %v1036, 2.0
    %v1437 = vadd.f32 %v1037, 2.0
    %v1438 = vadd.f32 %v1038, 2.0
    %v1439 = vadd.f32 %v1039, 2.0
    %v1440 = vadd.f32 %v1040, 2.0
    %v1441 = vadd.f32 %v1041, 2.0
    %v1442 = vadd.f32 %v1042, 2.0
    %v1443 = vadd.f32 %v1043, 2.0
    %v1444 = vadd.f32 %v1044, 2.0
    %v1445 = vadd.f32 %v1045, 2.0
    %v1446 = vadd.f32 %v1046, 2.0
    %v1447 = vadd.f32 %v1047, 2.0
    %v1448 = vadd.f32 %v1048, 2.0
    %v1449 = vadd.f32 %v1049, 2.0
    %v1450 = vadd.f32 %v1050, 2.0
    %v1451 = vadd.f32 %v1051, 2.0
    %v1452 = vadd.f32 %v1052, 2.0
    %v1453 = vadd.f32 %v1053, 2.0
    %v1454 = vadd.f32 %v1054, 2.0
    %v1455 = vadd.f32 %v1055, 2.0
    %v1456 = vadd.f32 %v1056, 2.0
    %v1457 = vadd.f32 %v1057, 2.0
    %v1458 = vadd.f32 %v1058, 2.0
    %v1459 = vadd.f32 %v1059, 2.0
    %v1460 = vadd.f32 %v1060, 2.0
    %v1461 = vadd.f32 %v1061, 2.0
    %v1462 = vadd.f32 %v1062, 2.0
    %v1463 = vadd.f32 %v1063, 2.0
    %v1464 = vadd.f32 %v1064, 2.0
    %v1465 = vadd.f32 %v1065, 2.0
    %v1466 = vadd.f32 %v1066, 2.0
    %v1467 = vadd.f32 %v1067, 2.0
    %v1468 = vadd.f32 %v1068, 2.0
    %v1469 = vadd.f32 %v1069, 2.0
    %v1470 = vadd.f32 %v1070, 2.0
    %v1471 = vadd.f32 %v1071, 2.0
    %v1472 = vadd.f32 %v1072, 2.0
    %v1473 = vadd.f32 %v1073, 2.0
    %v1474 = vadd.f32 %v1074, 2.0
    %v1475 = vadd.f32 %v1075, 2.0
    %v1476 = vadd.f32 %v1076, 2.0
    %v1477 = vadd.f32 %v1077, 2.0
    %v1478 = vadd.f32 %v1078, 2.0
    %v1479 = vadd.f32 %v1079, 2.0
    %v1480 = vadd.f32 %v1080, 2.0
    %v1481 = vadd.f32 %v1081, 2.0
    %v1482 = vadd.f32 %v1082, 2.0
    %v1483 = vadd.f32 %v1083, 2.0
    %v1484 = vadd.f32 %v1084, 2.0
    %v1485 = vadd.f32 %v1085, 2.0
    %v1486 = vadd.f32 %v1086, 2.0
    %v1487 = vadd.f32 %v1087, 2.0
    %v1488 = vadd.f32 %v1088, 2.0
    %v1489 = vadd.f32 %v1089, 2.0
    %v1490 = vadd.f32 %v1090, 2.0
    %v1491 = vadd.f32 %v1091, 2.0
    %v1492 = vadd.f32 %v1092, 2.0
    %v1493 = vadd.f32 %v1093, 2.0
    %v1494 = vadd.f32 %v1094, 2.0
    %v1495 = vadd.f32 %v1095, 2.0
    %v1496 = vadd.f32 %v1096, 2.0
    %v1497 = vadd.f32 %v1097, 2.0
    %v1498 = vadd.f32 %v1098, 2.0
    %v1499 = vadd.f32 %v1099, 2.0
    %v1500 = vadd.f32 %v1100, 2.0
    %v1501 = vadd.f32 %v1101, 2.0
    %v1502 = vadd.f32 %v1102, 2.0
    %v1503 = vadd.f32 %v1103, 2.0
    %v1504 = vadd.f32 %v1104, 2.0
    %v1505 = vadd.f32 %v1105, 2.0
    %v1506 = vadd.f32 %v1106, 2.0
    %v1507 = vadd.f32 %v1107, 2.0
    %v1508 = vadd.f32 %v1108, 2.0
    %v1509 = vadd.f32 %v1109, 2.0
    %v1510 = vadd.f32 %v1110, 2.0
    %v1511 = vadd.f32 %v1111, 2.0
    %v1512 = vadd.f32 %v1112, 2.0
    %v1513 = vadd.f32 %v1113, 2.0
    %v1514 = vadd.f32 %v1114, 2.0
    %v1515 = vadd.f32 %v1115, 2.0
    %v1516 = vadd.f32 %v1116, 2.0
    %v1517 = vadd.f32 %v1117, 2.0
    %v1518 = vadd.f32 %v1118, 2.0
    %v1519 = vadd.f32 %v1119, 2.0
    %v1520 = vadd.f32 %v1120, 2.0
    %v1521 = vadd.f32 %v1121, 2.0
    %v1522 = vadd.f32 %v1122, 2.0
    %v1523 = vadd.f32 %v1123, 2.0
    %v1524 = vadd.f32 %v1124, 2.0
    %v1525 = vadd.f32 %v1125, 2.0
    %v1526 = vadd.f32 %v1126, 2.0
    %v1527 = vadd.f32 %v1127, 2.0
    %v1528 = vadd.f32 %v1128, 2.0
    %v1529 = vadd.f32 %v1129, 2.0
    %v1530 = vadd.f32 %v1130, 2.0
    %v1531 = vadd.f32 %v1131, 2.0
    %v1532 = vadd.f32 %v1132, 2.0
    %v1533 = vadd.f32 %v1133, 2.0
    %v1534 = vadd.f32 %v1134, 2.0
    %v1535 = vadd.f32 %v1135, 2.0
    %v1536 = vadd.f32 %v1136, 2.0
    %v1537 = vadd.f32 %v1137, 2.0
    %v1538 = vadd.f32 %v1138, 2.0
    %v1539 = vadd.f32 %v1139, 2.0
    %v1540 = vadd.f32 %v1140, 2.0
    %v1541 = vadd.f32 %v1141, 2.0
    %v1542 = vadd.f32 %v1142, 2.0
    %v1543 = vadd.f32 %v1143, 2.0
    %v1544 = vadd.f32 %v1144, 2.0
    %v1545 = vadd.f32 %v1145, 2.0
    %v1546 = vadd.f32 %v1146, 2.0
    %v1547 = vadd.f32 %v1147, 2.0
    %v1548 = vadd.f32 %v1148, 2.0
    %v1549 = vadd.f32 %v1149, 2.0
    %v1550 = vadd.f32 %v1150, 2.0
    %v1551 = vadd.f32 %v1151, 2.0
    %v1552 = vadd.f32 %v1152, 2.0
    %v1553 = vadd.f32 %v1153, 2.0
    %v1554 = vadd.f32 %v1154, 2.0
    %v1555 = vadd.f32 %v1155, 2.0
    %v1556 = vadd.f32 %v1156, 2.0
    %v1557 = vadd.f32 %v1157, 2.0
    %v1558 = vadd.f32 %v1158, 2.0
    %v1559 = vadd.f32 %v1159, 2.0
    %v1560 = vadd.f32 %v1160, 2.0
    %v1561 = vadd.f32 %v1161, 2.0
    %v1562 = vadd.f32 %v1162, 2.0
    %v1563 = vadd.f32 %v1163, 2.0
    %v1564 = vadd.f32 %v1164, 2.0
    %v1565 = vadd.f32 %v1165, 2.0
    %v1566 = vadd.f32 %v1166, 2.0
    %v1567 = vadd.f32 %v1167, 2.0
    %v1568 = vadd.f32 %v1168, 2.0
    %v1569 = vadd.f32 %v1169, 2.0
    %v1570 = vadd.f32 %v1170, 2.0
    %v1571 = vadd.f32 %v1171, 2.0
    %v1572 = vadd.f32 %v1172, 2.0
    %v1573 = vadd.f32 %v1173, 2.0
    %v1574 = vadd.f32 %v1174, 2.0
    %v1575 = vadd.f32 %v1175, 2.0
    %v1576 = vadd.f32 %v1176, 2.0
    %v1577 = vadd.f32 %v1177, 2.0
    %v1578 = vadd.f32 %v1178, 2.0
    %v1579 = vadd.f32 %v1179, 2.0
    %v1580 = vadd.f32 %v1180, 2.0
    %v1581 = vadd.f32 %v1181, 2.0
    %v1582 = vadd.f32 %v1182, 2.0
    %v1583 = vadd.f32 %v1183, 2.0
    %v1584 = vadd.f32 %v1184, 2.0
    %v1585 = vadd.f32 %v1185, 2.0
    %v1586 = vadd.f32 %v1186, 2.0
    %v1587 = vadd.f32 %v1187, 2.0
    %v1588 = vadd.f32 %v1188, 2.0
    %v1589 = vadd.f32 %v1189, 2.0
    %v1590 = vadd.f32 %v1190, 2.0
    %v1591 = vadd.f32 %v1191, 2.0
    %v1592 = vadd.f32 %v1192, 2.0
    %v1593 = vadd.f32 %v1193, 2.0
    %v1594 = vadd.f32 %v1194, 2.0
    %v1595 = vadd.f32 %v1195, 2.0
    %v1596 = vadd.f32 %v1196, 2.0
    %v1597 = vadd.f32 %v1197, 2.0
    %v1598 = vadd.f32 %v1198, 2.0
    %v1599 = vadd.f32 %v1199, 2.0
    %v1600 = vadd.f32 %v1200, 2.0
    %v1601 = vadd.f32 %v1201, 2.0
    %v1602 = vadd.f32 %v1202, 2.0
    %v1603 = vadd.f32 %v1203, 2.0
    %v1604 = vadd.f32 %v1204, 2.0
    %v1605 = vadd.f32 %v1205, 2.0
    %v1606 = vadd.f32 %v1206, 2.0
    %v1607 = vadd.f32 %v1207, 2.0
    %v1608 = vadd.f32 %v1208, 2.0
    %v1609 = vadd.f32 %v1209, 2.0
    %v1610 = vadd.f32 %v1210, 2.0
    %v1611 = vadd.f32 %v1211, 2.0
    %v1612 = vadd.f32 %v1212, 2.0
    %v1613 = vadd.f32 %v1213, 2.0
    %v1614 = vadd.f32 %v1214, 2.0
    %v1615 = vadd.f32 %v1215, 2.0
    %v1616 = vadd.f32 %v1216, 2.0
    %v1617 = vadd.f32 %v1217, 2.0
    %v1618 = vadd.f32 %v1218, 2.0
    %v1619 = vadd.f32 %v1219, 2.0
    %v1620 = vadd.f32 %v1220, 2.0
    %v1621 = vadd.f32 %v1221, 2.0
    %v1622 = vadd.f32 %v1222, 2.0
    %v1623 = vadd.f32 %v1223, 2.0
    %v1624 = vadd.f32 %v1224, 2.0
    %v1625 = vadd.f32 %v1225, 2.0
    %v1626 = vadd.f32 %v1226, 2.0
    %v1627 = vadd.f32 %v1227, 2.0
    %v1628 = vadd.f32 %v1228, 2.0
    %v1629 = vadd.f32 %v1229, 2.0
    %v1630 = vadd.f32 %v1230, 2.0
    %v1631 = vadd.f32 %v1231, 2.0
    %v1632 = vadd.f32 %v1232, 2.0
    %v1633 = vadd.f32 %v1233, 2.0
    %v1634 = vadd.f32 %v1234, 2.0
    %v1635 = vadd.f32 %v1235, 2.0
    %v1636 = vadd.f32 %v1236, 2.0
    %v1637 = vadd.f32 %v1237, 2.0
    %v1638 = vadd.f32 %v1238, 2.0
    %v1639 = vadd.f32 %v1239, 2.0
    %v1640 = vadd.f32 %v1240, 2.0
    %v1641 = vadd.f32 %v1241, 2.0
    %v1642 = vadd.f32 %v1242, 2.0
    %v1643 = vadd.f32 %v1243, 2.0
    %1644 = vst [vmem:[#allocation7] sm:$0xff] %v1244
    %1645 = vst [vmem:[#allocation7 + $0x8] sm:$0xff] %v1245
    %1646 = vst [vmem:[#allocation7 + $0x10] sm:$0xff] %v1246
    %1647 = vst [vmem:[#allocation7 + $0x18] sm:$0xff] %v1247
    %1648 = vst [vmem:[#allocation7 + $0x20] sm:$0xff] %v1248
    %1649 = vst [vmem:[#allocation7 + $0x28] sm:$0xff] %v1249
    %1650 = vst [vmem:[#allocation7 + $0x30] sm:$0xff] %v1250
    %1651 = vst [vmem:[#allocation7 + $0x38] sm:$0xff] %v1251
    %1652 = vst [vmem:[#allocation7 + $0x40] sm:$0xff] %v1252
    %1653 = vst [vmem:[#allocation7 + $0x48] sm:$0xff] %v1253
    %1654 = vst [vmem:[#allocation7 + $0x50] sm:$0xff] %v1254
    %1655 = vst [vmem:[#allocation7 + $0x58] sm:$0xff] %v1255
    %1656 = vst [vmem:[#allocation7 + $0x60] sm:$0xff] %v1256
    %1657 = vst [vmem:[#allocation7 + $0x68] sm:$0xff] %v1257
    %1658 = vst [vmem:[#allocation7 + $0x70] sm:$0xff] %v1258
    %1659 = vst [vmem:[#allocation7 + $0x78] sm:$0xff] %v1259
    %1660 = vst [vmem:[#allocation7 + $0x80] sm:$0xff] %v1260
    %1661 = vst [vmem:[#allocation7 + $0x88] sm:$0xff] %v1261
    %1662 = vst [vmem:[#allocation7 + $0x90] sm:$0xff] %v1262
    %1663 = vst [vmem:[#allocation7 + $0x98] sm:$0xff] %v1263
    %1664 = vst [vmem:[#allocation7 + $0xa0] sm:$0xff] %v1264
    %1665 = vst [vmem:[#allocation7 + $0xa8] sm:$0xff] %v1265
    %1666 = vst [vmem:[#allocation7 + $0xb0] sm:$0xff] %v1266
    %1667 = vst [vmem:[#allocation7 + $0xb8] sm:$0xff] %v1267
    %1668 = vst [vmem:[#allocation7 + $0xc0] sm:$0xff] %v1268
    %1669 = vst [vmem:[#allocation7 + $0xc8] sm:$0xff] %v1269
    %1670 = vst [vmem:[#allocation7 + $0xd0] sm:$0xff] %v1270
    %1671 = vst [vmem:[#allocation7 + $0xd8] sm:$0xff] %v1271
    %1672 = vst [vmem:[#allocation7 + $0xe0] sm:$0xff] %v1272
    %1673 = vst [vmem:[#allocation7 + $0xe8] sm:$0xff] %v1273
    %1674 = vst [vmem:[#allocation7 + $0xf0] sm:$0xff] %v1274
    %1675 = vst [vmem:[#allocation7 + $0xf8] sm:$0xff] %v1275
    %1676 = vst [vmem:[#allocation7 + $0x100] sm:$0xff] %v1276
    %1677 = vst [vmem:[#allocation7 + $0x108] sm:$0xff] %v1277
    %1678 = vst [vmem:[#allocation7 + $0x110] sm:$0xff] %v1278
    %1679 = vst [vmem:[#allocation7 + $0x118] sm:$0xff] %v1279
    %1680 = vst [vmem:[#allocation7 + $0x120] sm:$0xff] %v1280
    %1681 = vst [vmem:[#allocation7 + $0x128] sm:$0xff] %v1281
    %1682 = vst [vmem:[#allocation7 + $0x130] sm:$0xff] %v1282
    %1683 = vst [vmem:[#allocation7 + $0x138] sm:$0xff] %v1283
    %1684 = vst [vmem:[#allocation7 + $0x140] sm:$0xff] %v1284
    %1685 = vst [vmem:[#allocation7 + $0x148] sm:$0xff] %v1285
    %1686 = vst [vmem:[#allocation7 + $0x150] sm:$0xff] %v1286
    %1687 = vst [vmem:[#allocation7 + $0x158] sm:$0xff] %v1287
    %1688 = vst [vmem:[#allocation7 + $0x160] sm:$0xff] %v1288
    %1689 = vst [vmem:[#allocation7 + $0x168] sm:$0xff] %v1289
    %1690 = vst [vmem:[#allocation7 + $0x170] sm:$0xff] %v1290
    %1691 = vst [vmem:[#allocation7 + $0x178] sm:$0xff] %v1291
    %1692 = vst [vmem:[#allocation7 + $0x180] sm:$0xff] %v1292
    %1693 = vst [vmem:[#allocation7 + $0x188] sm:$0xff] %v1293
    %1694 = vst [vmem:[#allocation7 + $0x190] sm:$0xff] %v1294
    %1695 = vst [vmem:[#allocation7 + $0x198] sm:$0xff] %v1295
    %1696 = vst [vmem:[#allocation7 + $0x1a0] sm:$0xff] %v1296
    %1697 = vst [vmem:[#allocation7 + $0x1a8] sm:$0xff] %v1297
    %1698 = vst [vmem:[#allocation7 + $0x1b0] sm:$0xff] %v1298
    %1699 = vst [vmem:[#allocation7 + $0x1b8] sm:$0xff] %v1299
    %1700 = vst [vmem:[#allocation7 + $0x1c0] sm:$0xff] %v1300
    %1701 = vst [vmem:[#allocation7 + $0x1c8] sm:$0xff] %v1301
    %1702 = vst [vmem:[#allocation7 + $0x1d0] sm:$0xff] %v1302
    %1703 = vst [vmem:[#allocation7 + $0x1d8] sm:$0xff] %v1303
    %1704 = vst [vmem:[#allocation7 + $0x1e0] sm:$0xff] %v1304
    %1705 = vst [vmem:[#allocation7 + $0x1e8] sm:$0xff] %v1305
    %1706 = vst [vmem:[#allocation7 + $0x1f0] sm:$0xff] %v1306
    %1707 = vst [vmem:[#allocation7 + $0x1f8] sm:$0xff] %v1307
    %1708 = vst [vmem:[#allocation7 + $0x200] sm:$0xff] %v1308
    %1709 = vst [vmem:[#allocation7 + $0x208] sm:$0xff] %v1309
    %1710 = vst [vmem:[#allocation7 + $0x210] sm:$0xff] %v1310
    %1711 = vst [vmem:[#allocation7 + $0x218] sm:$0xff] %v1311
    %1712 = vst [vmem:[#allocation7 + $0x220] sm:$0xff] %v1312
    %1713 = vst [vmem:[#allocation7 + $0x228] sm:$0xff] %v1313
    %1714 = vst [vmem:[#allocation7 + $0x230] sm:$0xff] %v1314
    %1715 = vst [vmem:[#allocation7 + $0x238] sm:$0xff] %v1315
    %1716 = vst [vmem:[#allocation7 + $0x240] sm:$0xff] %v1316
    %1717 = vst [vmem:[#allocation7 + $0x248] sm:$0xff] %v1317
    %1718 = vst [vmem:[#allocation7 + $0x250] sm:$0xff] %v1318
    %1719 = vst [vmem:[#allocation7 + $0x258] sm:$0xff] %v1319
    %1720 = vst [vmem:[#allocation7 + $0x260] sm:$0xff] %v1320
    %1721 = vst [vmem:[#allocation7 + $0x268] sm:$0xff] %v1321
    %1722 = vst [vmem:[#allocation7 + $0x270] sm:$0xff] %v1322
    %1723 = vst [vmem:[#allocation7 + $0x278] sm:$0xff] %v1323
    %1724 = vst [vmem:[#allocation7 + $0x280] sm:$0xff] %v1324
    %1725 = vst [vmem:[#allocation7 + $0x288] sm:$0xff] %v1325
    %1726 = vst [vmem:[#allocation7 + $0x290] sm:$0xff] %v1326
    %1727 = vst [vmem:[#allocation7 + $0x298] sm:$0xff] %v1327
    %1728 = vst [vmem:[#allocation7 + $0x2a0] sm:$0xff] %v1328
    %1729 = vst [vmem:[#allocation7 + $0x2a8] sm:$0xff] %v1329
    %1730 = vst [vmem:[#allocation7 + $0x2b0] sm:$0xff] %v1330
    %1731 = vst [vmem:[#allocation7 + $0x2b8] sm:$0xff] %v1331
    %1732 = vst [vmem:[#allocation7 + $0x2c0] sm:$0xff] %v1332
    %1733 = vst [vmem:[#allocation7 + $0x2c8] sm:$0xff] %v1333
    %1734 = vst [vmem:[#allocation7 + $0x2d0] sm:$0xff] %v1334
    %1735 = vst [vmem:[#allocation7 + $0x2d8] sm:$0xff] %v1335
    %1736 = vst [vmem:[#allocation7 + $0x2e0] sm:$0xff] %v1336
    %1737 = vst [vmem:[#allocation7 + $0x2e8] sm:$0xff] %v1337
    %1738 = vst [vmem:[#allocation7 + $0x2f0] sm:$0xff] %v1338
    %1739 = vst [vmem:[#allocation7 + $0x2f8] sm:$0xff] %v1339
    %1740 = vst [vmem:[#allocation7 + $0x300] sm:$0xff] %v1340
    %1741 = vst [vmem:[#allocation7 + $0x308] sm:$0xff] %v1341
    %1742 = vst [vmem:[#allocation7 + $0x310] sm:$0xff] %v1342
    %1743 = vst [vmem:[#allocation7 + $0x318] sm:$0xff] %v1343
    %1744 = vst [vmem:[#allocation7 + $0x320] sm:$0xff] %v1344
    %1745 = vst [vmem:[#allocation7 + $0x328] sm:$0xff] %v1345
    %1746 = vst [vmem:[#allocation7 + $0x330] sm:$0xff] %v1346
    %1747 = vst [vmem:[#allocation7 + $0x338] sm:$0xff] %v1347
    %1748 = vst [vmem:[#allocation7 + $0x340] sm:$0xff] %v1348
    %1749 = vst [vmem:[#allocation7 + $0x348] sm:$0xff] %v1349
    %1750 = vst [vmem:[#allocation7 + $0x350] sm:$0xff] %v1350
    %1751 = vst [vmem:[#allocation7 + $0x358] sm:$0xff] %v1351
    %1752 = vst [vmem:[#allocation7 + $0x360] sm:$0xff] %v1352
    %1753 = vst [vmem:[#allocation7 + $0x368] sm:$0xff] %v1353
    %1754 = vst [vmem:[#allocation7 + $0x370] sm:$0xff] %v1354
    %1755 = vst [vmem:[#allocation7 + $0x378] sm:$0xff] %v1355
    %1756 = vst [vmem:[#allocation7 + $0x380] sm:$0xff] %v1356
    %1757 = vst [vmem:[#allocation7 + $0x388] sm:$0xff] %v1357
    %1758 = vst [vmem:[#allocation7 + $0x390] sm:$0xff] %v1358
    %1759 = vst [vmem:[#allocation7 + $0x398] sm:$0xff] %v1359
    %1760 = vst [vmem:[#allocation7 + $0x3a0] sm:$0xff] %v1360
    %1761 = vst [vmem:[#allocation7 + $0x3a8] sm:$0xff] %v1361
    %1762 = vst [vmem:[#allocation7 + $0x3b0] sm:$0xff] %v1362
    %1763 = vst [vmem:[#allocation7 + $0x3b8] sm:$0xff] %v1363
    %1764 = vst [vmem:[#allocation7 + $0x3c0] sm:$0xff] %v1364
    %1765 = vst [vmem:[#allocation7 + $0x3c8] sm:$0xff] %v1365
    %1766 = vst [vmem:[#allocation7 + $0x3d0] sm:$0xff] %v1366
    %1767 = vst [vmem:[#allocation7 + $0x3d8] sm:$0xff] %v1367
    %1768 = vst [vmem:[#allocation7 + $0x3e0] sm:$0xff] %v1368
    %1769 = vst [vmem:[#allocation7 + $0x3e8] sm:$0xff] %v1369
    %1770 = vst [vmem:[#allocation7 + $0x3f0] sm:$0xff] %v1370
    %1771 = vst [vmem:[#allocation7 + $0x3f8] sm:$0xff] %v1371
    %1772 = vst [vmem:[#allocation7 + $0x400] sm:$0xff] %v1372
    %1773 = vst [vmem:[#allocation7 + $0x408] sm:$0xff] %v1373
    %1774 = vst [vmem:[#allocation7 + $0x410] sm:$0xff] %v1374
    %1775 = vst [vmem:[#allocation7 + $0x418] sm:$0xff] %v1375
    %1776 = vst [vmem:[#allocation7 + $0x420] sm:$0xff] %v1376
    %1777 = vst [vmem:[#allocation7 + $0x428] sm:$0xff] %v1377
    %1778 = vst [vmem:[#allocation7 + $0x430] sm:$0xff] %v1378
    %1779 = vst [vmem:[#allocation7 + $0x438] sm:$0xff] %v1379
    %1780 = vst [vmem:[#allocation7 + $0x440] sm:$0xff] %v1380
    %1781 = vst [vmem:[#allocation7 + $0x448] sm:$0xff] %v1381
    %1782 = vst [vmem:[#allocation7 + $0x450] sm:$0xff] %v1382
    %1783 = vst [vmem:[#allocation7 + $0x458] sm:$0xff] %v1383
    %1784 = vst [vmem:[#allocation7 + $0x460] sm:$0xff] %v1384
    %1785 = vst [vmem:[#allocation7 + $0x468] sm:$0xff] %v1385
    %1786 = vst [vmem:[#allocation7 + $0x470] sm:$0xff] %v1386
    %1787 = vst [vmem:[#allocation7 + $0x478] sm:$0xff] %v1387
    %1788 = vst [vmem:[#allocation7 + $0x480] sm:$0xff] %v1388
    %1789 = vst [vmem:[#allocation7 + $0x488] sm:$0xff] %v1389
    %1790 = vst [vmem:[#allocation7 + $0x490] sm:$0xff] %v1390
    %1791 = vst [vmem:[#allocation7 + $0x498] sm:$0xff] %v1391
    %1792 = vst [vmem:[#allocation7 + $0x4a0] sm:$0xff] %v1392
    %1793 = vst [vmem:[#allocation7 + $0x4a8] sm:$0xff] %v1393
    %1794 = vst [vmem:[#allocation7 + $0x4b0] sm:$0xff] %v1394
    %1795 = vst [vmem:[#allocation7 + $0x4b8] sm:$0xff] %v1395
    %1796 = vst [vmem:[#allocation7 + $0x4c0] sm:$0xff] %v1396
    %1797 = vst [vmem:[#allocation7 + $0x4c8] sm:$0xff] %v1397
    %1798 = vst [vmem:[#allocation7 + $0x4d0] sm:$0xff] %v1398
    %1799 = vst [vmem:[#allocation7 + $0x4d8] sm:$0xff] %v1399
    %1800 = vst [vmem:[#allocation7 + $0x4e0] sm:$0xff] %v1400
    %1801 = vst [vmem:[#allocation7 + $0x4e8] sm:$0xff] %v1401
    %1802 = vst [vmem:[#allocation7 + $0x4f0] sm:$0xff] %v1402
    %1803 = vst [vmem:[#allocation7 + $0x4f8] sm:$0xff] %v1403
    %1804 = vst [vmem:[#allocation7 + $0x500] sm:$0xff] %v1404
    %1805 = vst [vmem:[#allocation7 + $0x508] sm:$0xff] %v1405
    %1806 = vst [vmem:[#allocation7 + $0x510] sm:$0xff] %v1406
    %1807 = vst [vmem:[#allocation7 + $0x518] sm:$0xff] %v1407
    %1808 = vst [vmem:[#allocation7 + $0x520] sm:$0xff] %v1408
    %1809 = vst [vmem:[#allocation7 + $0x528] sm:$0xff] %v1409
    %1810 = vst [vmem:[#allocation7 + $0x530] sm:$0xff] %v1410
    %1811 = vst [vmem:[#allocation7 + $0x538] sm:$0xff] %v1411
    %1812 = vst [vmem:[#allocation7 + $0x540] sm:$0xff] %v1412
    %1813 = vst [vmem:[#allocation7 + $0x548] sm:$0xff] %v1413
    %1814 = vst [vmem:[#allocation7 + $0x550] sm:$0xff] %v1414
    %1815 = vst [vmem:[#allocation7 + $0x558] sm:$0xff] %v1415
    %1816 = vst [vmem:[#allocation7 + $0x560] sm:$0xff] %v1416
    %1817 = vst [vmem:[#allocation7 + $0x568] sm:$0xff] %v1417
    %1818 = vst [vmem:[#allocation7 + $0x570] sm:$0xff] %v1418
    %1819 = vst [vmem:[#allocation7 + $0x578] sm:$0xff] %v1419
    %1820 = vst [vmem:[#allocation7 + $0x580] sm:$0xff] %v1420
    %1821 = vst [vmem:[#allocation7 + $0x588] sm:$0xff] %v1421
    %1822 = vst [vmem:[#allocation7 + $0x590] sm:$0xff] %v1422
    %1823 = vst [vmem:[#allocation7 + $0x598] sm:$0xff] %v1423
    %1824 = vst [vmem:[#allocation7 + $0x5a0] sm:$0xff] %v1424
    %1825 = vst [vmem:[#allocation7 + $0x5a8] sm:$0xff] %v1425
    %1826 = vst [vmem:[#allocation7 + $0x5b0] sm:$0xff] %v1426
    %1827 = vst [vmem:[#allocation7 + $0x5b8] sm:$0xff] %v1427
    %1828 = vst [vmem:[#allocation7 + $0x5c0] sm:$0xff] %v1428
    %1829 = vst [vmem:[#allocation7 + $0x5c8] sm:$0xff] %v1429
    %1830 = vst [vmem:[#allocation7 + $0x5d0] sm:$0xff] %v1430
    %1831 = vst [vmem:[#allocation7 + $0x5d8] sm:$0xff] %v1431
    %1832 = vst [vmem:[#allocation7 + $0x5e0] sm:$0xff] %v1432
    %1833 = vst [vmem:[#allocation7 + $0x5e8] sm:$0xff] %v1433
    %1834 = vst [vmem:[#allocation7 + $0x5f0] sm:$0xff] %v1434
    %1835 = vst [vmem:[#allocation7 + $0x5f8] sm:$0xff] %v1435
    %1836 = vst [vmem:[#allocation7 + $0x600] sm:$0xff] %v1436
    %1837 = vst [vmem:[#allocation7 + $0x608] sm:$0xff] %v1437
    %1838 = vst [vmem:[#allocation7 + $0x610] sm:$0xff] %v1438
    %1839 = vst [vmem:[#allocation7 + $0x618] sm:$0xff] %v1439
    %1840 = vst [vmem:[#allocation7 + $0x620] sm:$0xff] %v1440
    %1841 = vst [vmem:[#allocation7 + $0x628] sm:$0xff] %v1441
    %1842 = vst [vmem:[#allocation7 + $0x630] sm:$0xff] %v1442
    %1843 = vst [vmem:[#allocation7 + $0x638] sm:$0xff] %v1443
    %1844 = vst [vmem:[#allocation7 + $0x640] sm:$0xff] %v1444
    %1845 = vst [vmem:[#allocation7 + $0x648] sm:$0xff] %v1445
    %1846 = vst [vmem:[#allocation7 + $0x650] sm:$0xff] %v1446
    %1847 = vst [vmem:[#allocation7 + $0x658] sm:$0xff] %v1447
    %1848 = vst [vmem:[#allocation7 + $0x660] sm:$0xff] %v1448
    %1849 = vst [vmem:[#allocation7 + $0x668] sm:$0xff] %v1449
    %1850 = vst [vmem:[#allocation7 + $0x670] sm:$0xff] %v1450
    %1851 = vst [vmem:[#allocation7 + $0x678] sm:$0xff] %v1451
    %1852 = vst [vmem:[#allocation7 + $0x680] sm:$0xff] %v1452
    %1853 = vst [vmem:[#allocation7 + $0x688] sm:$0xff] %v1453
    %1854 = vst [vmem:[#allocation7 + $0x690] sm:$0xff] %v1454
    %1855 = vst [vmem:[#allocation7 + $0x698] sm:$0xff] %v1455
    %1856 = vst [vmem:[#allocation7 + $0x6a0] sm:$0xff] %v1456
    %1857 = vst [vmem:[#allocation7 + $0x6a8] sm:$0xff] %v1457
    %1858 = vst [vmem:[#allocation7 + $0x6b0] sm:$0xff] %v1458
    %1859 = vst [vmem:[#allocation7 + $0x6b8] sm:$0xff] %v1459
    %1860 = vst [vmem:[#allocation7 + $0x6c0] sm:$0xff] %v1460
    %1861 = vst [vmem:[#allocation7 + $0x6c8] sm:$0xff] %v1461
    %1862 = vst [vmem:[#allocation7 + $0x6d0] sm:$0xff] %v1462
    %1863 = vst [vmem:[#allocation7 + $0x6d8] sm:$0xff] %v1463
    %1864 = vst [vmem:[#allocation7 + $0x6e0] sm:$0xff] %v1464
    %1865 = vst [vmem:[#allocation7 + $0x6e8] sm:$0xff] %v1465
    %1866 = vst [vmem:[#allocation7 + $0x6f0] sm:$0xff] %v1466
    %1867 = vst [vmem:[#allocation7 + $0x6f8] sm:$0xff] %v1467
    %1868 = vst [vmem:[#allocation7 + $0x700] sm:$0xff] %v1468
    %1869 = vst [vmem:[#allocation7 + $0x708] sm:$0xff] %v1469
    %1870 = vst [vmem:[#allocation7 + $0x710] sm:$0xff] %v1470
    %1871 = vst [vmem:[#allocation7 + $0x718] sm:$0xff] %v1471
    %1872 = vst [vmem:[#allocation7 + $0x720] sm:$0xff] %v1472
    %1873 = vst [vmem:[#allocation7 + $0x728] sm:$0xff] %v1473
    %1874 = vst [vmem:[#allocation7 + $0x730] sm:$0xff] %v1474
    %1875 = vst [vmem:[#allocation7 + $0x738] sm:$0xff] %v1475
    %1876 = vst [vmem:[#allocation7 + $0x740] sm:$0xff] %v1476
    %1877 = vst [vmem:[#allocation7 + $0x748] sm:$0xff] %v1477
    %1878 = vst [vmem:[#allocation7 + $0x750] sm:$0xff] %v1478
    %1879 = vst [vmem:[#allocation7 + $0x758] sm:$0xff] %v1479
    %1880 = vst [vmem:[#allocation7 + $0x760] sm:$0xff] %v1480
    %1881 = vst [vmem:[#allocation7 + $0x768] sm:$0xff] %v1481
    %1882 = vst [vmem:[#allocation7 + $0x770] sm:$0xff] %v1482
    %1883 = vst [vmem:[#allocation7 + $0x778] sm:$0xff] %v1483
    %1884 = vst [vmem:[#allocation7 + $0x780] sm:$0xff] %v1484
    %1885 = vst [vmem:[#allocation7 + $0x788] sm:$0xff] %v1485
    %1886 = vst [vmem:[#allocation7 + $0x790] sm:$0xff] %v1486
    %1887 = vst [vmem:[#allocation7 + $0x798] sm:$0xff] %v1487
    %1888 = vst [vmem:[#allocation7 + $0x7a0] sm:$0xff] %v1488
    %1889 = vst [vmem:[#allocation7 + $0x7a8] sm:$0xff] %v1489
    %1890 = vst [vmem:[#allocation7 + $0x7b0] sm:$0xff] %v1490
    %1891 = vst [vmem:[#allocation7 + $0x7b8] sm:$0xff] %v1491
    %1892 = vst [vmem:[#allocation7 + $0x7c0] sm:$0xff] %v1492
    %1893 = vst [vmem:[#allocation7 + $0x7c8] sm:$0xff] %v1493
    %1894 = vst [vmem:[#allocation7 + $0x7d0] sm:$0xff] %v1494
    %1895 = vst [vmem:[#allocation7 + $0x7d8] sm:$0xff] %v1495
    %1896 = vst [vmem:[#allocation7 + $0x7e0] sm:$0xff] %v1496
    %1897 = vst [vmem:[#allocation7 + $0x7e8] sm:$0xff] %v1497
    %1898 = vst [vmem:[#allocation7 + $0x7f0] sm:$0xff] %v1498
    %1899 = vst [vmem:[#allocation7 + $0x7f8] sm:$0xff] %v1499
    %1900 = vst [vmem:[#allocation7 + $0x800] sm:$0xff] %v1500
    %1901 = vst [vmem:[#allocation7 + $0x808] sm:$0xff] %v1501
    %1902 = vst [vmem:[#allocation7 + $0x810] sm:$0xff] %v1502
    %1903 = vst [vmem:[#allocation7 + $0x818] sm:$0xff] %v1503
    %1904 = vst [vmem:[#allocation7 + $0x820] sm:$0xff] %v1504
    %1905 = vst [vmem:[#allocation7 + $0x828] sm:$0xff] %v1505
    %1906 = vst [vmem:[#allocation7 + $0x830] sm:$0xff] %v1506
    %1907 = vst [vmem:[#allocation7 + $0x838] sm:$0xff] %v1507
    %1908 = vst [vmem:[#allocation7 + $0x840] sm:$0xff] %v1508
    %1909 = vst [vmem:[#allocation7 + $0x848] sm:$0xff] %v1509
    %1910 = vst [vmem:[#allocation7 + $0x850] sm:$0xff] %v1510
    %1911 = vst [vmem:[#allocation7 + $0x858] sm:$0xff] %v1511
    %1912 = vst [vmem:[#allocation7 + $0x860] sm:$0xff] %v1512
    %1913 = vst [vmem:[#allocation7 + $0x868] sm:$0xff] %v1513
    %1914 = vst [vmem:[#allocation7 + $0x870] sm:$0xff] %v1514
    %1915 = vst [vmem:[#allocation7 + $0x878] sm:$0xff] %v1515
    %1916 = vst [vmem:[#allocation7 + $0x880] sm:$0xff] %v1516
    %1917 = vst [vmem:[#allocation7 + $0x888] sm:$0xff] %v1517
    %1918 = vst [vmem:[#allocation7 + $0x890] sm:$0xff] %v1518
    %1919 = vst [vmem:[#allocation7 + $0x898] sm:$0xff] %v1519
    %1920 = vst [vmem:[#allocation7 + $0x8a0] sm:$0xff] %v1520
    %1921 = vst [vmem:[#allocation7 + $0x8a8] sm:$0xff] %v1521
    %1922 = vst [vmem:[#allocation7 + $0x8b0] sm:$0xff] %v1522
    %1923 = vst [vmem:[#allocation7 + $0x8b8] sm:$0xff] %v1523
    %1924 = vst [vmem:[#allocation7 + $0x8c0] sm:$0xff] %v1524
    %1925 = vst [vmem:[#allocation7 + $0x8c8] sm:$0xff] %v1525
    %1926 = vst [vmem:[#allocation7 + $0x8d0] sm:$0xff] %v1526
    %1927 = vst [vmem:[#allocation7 + $0x8d8] sm:$0xff] %v1527
    %1928 = vst [vmem:[#allocation7 + $0x8e0] sm:$0xff] %v1528
    %1929 = vst [vmem:[#allocation7 + $0x8e8] sm:$0xff] %v1529
    %1930 = vst [vmem:[#allocation7 + $0x8f0] sm:$0xff] %v1530
    %1931 = vst [vmem:[#allocation7 + $0x8f8] sm:$0xff] %v1531
    %1932 = vst [vmem:[#allocation7 + $0x900] sm:$0xff] %v1532
    %1933 = vst [vmem:[#allocation7 + $0x908] sm:$0xff] %v1533
    %1934 = vst [vmem:[#allocation7 + $0x910] sm:$0xff] %v1534
    %1935 = vst [vmem:[#allocation7 + $0x918] sm:$0xff] %v1535
    %1936 = vst [vmem:[#allocation7 + $0x920] sm:$0xff] %v1536
    %1937 = vst [vmem:[#allocation7 + $0x928] sm:$0xff] %v1537
    %1938 = vst [vmem:[#allocation7 + $0x930] sm:$0xff] %v1538
    %1939 = vst [vmem:[#allocation7 + $0x938] sm:$0xff] %v1539
    %1940 = vst [vmem:[#allocation7 + $0x940] sm:$0xff] %v1540
    %1941 = vst [vmem:[#allocation7 + $0x948] sm:$0xff] %v1541
    %1942 = vst [vmem:[#allocation7 + $0x950] sm:$0xff] %v1542
    %1943 = vst [vmem:[#allocation7 + $0x958] sm:$0xff] %v1543
    %1944 = vst [vmem:[#allocation7 + $0x960] sm:$0xff] %v1544
    %1945 = vst [vmem:[#allocation7 + $0x968] sm:$0xff] %v1545
    %1946 = vst [vmem:[#allocation7 + $0x970] sm:$0xff] %v1546
    %1947 = vst [vmem:[#allocation7 + $0x978] sm:$0xff] %v1547
    %1948 = vst [vmem:[#allocation7 + $0x980] sm:$0xff] %v1548
    %1949 = vst [vmem:[#allocation7 + $0x988] sm:$0xff] %v1549
    %1950 = vst [vmem:[#allocation7 + $0x990] sm:$0xff] %v1550
    %1951 = vst [vmem:[#allocation7 + $0x998] sm:$0xff] %v1551
    %1952 = vst [vmem:[#allocation7 + $0x9a0] sm:$0xff] %v1552
    %1953 = vst [vmem:[#allocation7 + $0x9a8] sm:$0xff] %v1553
    %1954 = vst [vmem:[#allocation7 + $0x9b0] sm:$0xff] %v1554
    %1955 = vst [vmem:[#allocation7 + $0x9b8] sm:$0xff] %v1555
    %1956 = vst [vmem:[#allocation7 + $0x9c0] sm:$0xff] %v1556
    %1957 = vst [vmem:[#allocation7 + $0x9c8] sm:$0xff] %v1557
    %1958 = vst [vmem:[#allocation7 + $0x9d0] sm:$0xff] %v1558
    %1959 = vst [vmem:[#allocation7 + $0x9d8] sm:$0xff] %v1559
    %1960 = vst [vmem:[#allocation7 + $0x9e0] sm:$0xff] %v1560
    %1961 = vst [vmem:[#allocation7 + $0x9e8] sm:$0xff] %v1561
    %1962 = vst [vmem:[#allocation7 + $0x9f0] sm:$0xff] %v1562
    %1963 = vst [vmem:[#allocation7 + $0x9f8] sm:$0xff] %v1563
    %1964 = vst [vmem:[#allocation7 + $0xa00] sm:$0xff] %v1564
    %1965 = vst [vmem:[#allocation7 + $0xa08] sm:$0xff] %v1565
    %1966 = vst [vmem:[#allocation7 + $0xa10] sm:$0xff] %v1566
    %1967 = vst [vmem:[#allocation7 + $0xa18] sm:$0xff] %v1567
    %1968 = vst [vmem:[#allocation7 + $0xa20] sm:$0xff] %v1568
    %1969 = vst [vmem:[#allocation7 + $0xa28] sm:$0xff] %v1569
    %1970 = vst [vmem:[#allocation7 + $0xa30] sm:$0xff] %v1570
    %1971 = vst [vmem:[#allocation7 + $0xa38] sm:$0xff] %v1571
    %1972 = vst [vmem:[#allocation7 + $0xa40] sm:$0xff] %v1572
    %1973 = vst [vmem:[#allocation7 + $0xa48] sm:$0xff] %v1573
    %1974 = vst [vmem:[#allocation7 + $0xa50] sm:$0xff] %v1574
    %1975 = vst [vmem:[#allocation7 + $0xa58] sm:$0xff] %v1575
    %1976 = vst [vmem:[#allocation7 + $0xa60] sm:$0xff] %v1576
    %1977 = vst [vmem:[#allocation7 + $0xa68] sm:$0xff] %v1577
    %1978 = vst [vmem:[#allocation7 + $0xa70] sm:$0xff] %v1578
    %1979 = vst [vmem:[#allocation7 + $0xa78] sm:$0xff] %v1579
    %1980 = vst [vmem:[#allocation7 + $0xa80] sm:$0xff] %v1580
    %1981 = vst [vmem:[#allocation7 + $0xa88] sm:$0xff] %v1581
    %1982 = vst [vmem:[#allocation7 + $0xa90] sm:$0xff] %v1582
    %1983 = vst [vmem:[#allocation7 + $0xa98] sm:$0xff] %v1583
    %1984 = vst [vmem:[#allocation7 + $0xaa0] sm:$0xff] %v1584
    %1985 = vst [vmem:[#allocation7 + $0xaa8] sm:$0xff] %v1585
    %1986 = vst [vmem:[#allocation7 + $0xab0] sm:$0xff] %v1586
    %1987 = vst [vmem:[#allocation7 + $0xab8] sm:$0xff] %v1587
    %1988 = vst [vmem:[#allocation7 + $0xac0] sm:$0xff] %v1588
    %1989 = vst [vmem:[#allocation7 + $0xac8] sm:$0xff] %v1589
    %1990 = vst [vmem:[#allocation7 + $0xad0] sm:$0xff] %v1590
    %1991 = vst [vmem:[#allocation7 + $0xad8] sm:$0xff] %v1591
    %1992 = vst [vmem:[#allocation7 + $0xae0] sm:$0xff] %v1592
    %1993 = vst [vmem:[#allocation7 + $0xae8] sm:$0xff] %v1593
    %1994 = vst [vmem:[#allocation7 + $0xaf0] sm:$0xff] %v1594
    %1995 = vst [vmem:[#allocation7 + $0xaf8] sm:$0xff] %v1595
    %1996 = vst [vmem:[#allocation7 + $0xb00] sm:$0xff] %v1596
    %1997 = vst [vmem:[#allocation7 + $0xb08] sm:$0xff] %v1597
    %1998 = vst [vmem:[#allocation7 + $0xb10] sm:$0xff] %v1598
    %1999 = vst [vmem:[#allocation7 + $0xb18] sm:$0xff] %v1599
    %2000 = vst [vmem:[#allocation7 + $0xb20] sm:$0xff] %v1600
    %2001 = vst [vmem:[#allocation7 + $0xb28] sm:$0xff] %v1601
    %2002 = vst [vmem:[#allocation7 + $0xb30] sm:$0xff] %v1602
    %2003 = vst [vmem:[#allocation7 + $0xb38] sm:$0xff] %v1603
    %2004 = vst [vmem:[#allocation7 + $0xb40] sm:$0xff] %v1604
    %2005 = vst [vmem:[#allocation7 + $0xb48] sm:$0xff] %v1605
    %2006 = vst [vmem:[#allocation7 + $0xb50] sm:$0xff] %v1606
    %2007 = vst [vmem:[#allocation7 + $0xb58] sm:$0xff] %v1607
    %2008 = vst [vmem:[#allocation7 + $0xb60] sm:$0xff] %v1608
    %2009 = vst [vmem:[#allocation7 + $0xb68] sm:$0xff] %v1609
    %2010 = vst [vmem:[#allocation7 + $0xb70] sm:$0xff] %v1610
    %2011 = vst [vmem:[#allocation7 + $0xb78] sm:$0xff] %v1611
    %2012 = vst [vmem:[#allocation7 + $0xb80] sm:$0xff] %v1612
    %2013 = vst [vmem:[#allocation7 + $0xb88] sm:$0xff] %v1613
    %2014 = vst [vmem:[#allocation7 + $0xb90] sm:$0xff] %v1614
    %2015 = vst [vmem:[#allocation7 + $0xb98] sm:$0xff] %v1615
    %2016 = vst [vmem:[#allocation7 + $0xba0] sm:$0xff] %v1616
    %2017 = vst [vmem:[#allocation7 + $0xba8] sm:$0xff] %v1617
    %2018 = vst [vmem:[#allocation7 + $0xbb0] sm:$0xff] %v1618
    %2019 = vst [vmem:[#allocation7 + $0xbb8] sm:$0xff] %v1619
    %2020 = vst [vmem:[#allocation7 + $0xbc0] sm:$0xff] %v1620
    %2021 = vst [vmem:[#allocation7 + $0xbc8] sm:$0xff] %v1621
    %2022 = vst [vmem:[#allocation7 + $0xbd0] sm:$0xff] %v1622
    %2023 = vst [vmem:[#allocation7 + $0xbd8] sm:$0xff] %v1623
    %2024 = vst [vmem:[#allocation7 + $0xbe0] sm:$0xff] %v1624
    %2025 = vst [vmem:[#allocation7 + $0xbe8] sm:$0xff] %v1625
    %2026 = vst [vmem:[#allocation7 + $0xbf0] sm:$0xff] %v1626
    %2027 = vst [vmem:[#allocation7 + $0xbf8] sm:$0xff] %v1627
    %2028 = vst [vmem:[#allocation7 + $0xc00] sm:$0xff] %v1628
    %2029 = vst [vmem:[#allocation7 + $0xc08] sm:$0xff] %v1629
    %2030 = vst [vmem:[#allocation7 + $0xc10] sm:$0xff] %v1630
    %2031 = vst [vmem:[#allocation7 + $0xc18] sm:$0xff] %v1631
    %2032 = vst [vmem:[#allocation7 + $0xc20] sm:$0xff] %v1632
    %2033 = vst [vmem:[#allocation7 + $0xc28] sm:$0xff] %v1633
    %2034 = vst [vmem:[#allocation7 + $0xc30] sm:$0xff] %v1634
    %2035 = vst [vmem:[#allocation7 + $0xc38] sm:$0xff] %v1635
    %2036 = vst [vmem:[#allocation7 + $0xc40] sm:$0xff] %v1636
    %2037 = vst [vmem:[#allocation7 + $0xc48] sm:$0xff] %v1637
    %2038 = vst [vmem:[#allocation7 + $0xc50] sm:$0xff] %v1638
    %2039 = vst [vmem:[#allocation7 + $0xc58] sm:$0xff] %v1639
    %2040 = vst [vmem:[#allocation7 + $0xc60] sm:$0xff] %v1640
    %2041 = vst [vmem:[#allocation7 + $0xc68] sm:$0xff] %v1641
    %2042 = vst [vmem:[#allocation7 + $0xc70] sm:$0xff] %v1642
    %2043 = vst [vmem:[#allocation7 + $0xc78] sm:$0xff] %v1643
    // Predicated region
    $region18: #{tpu_custom_call.1} parent=1 // pred_check
      _
    $region19: #{tpu_custom_call.1} parent=1 // pred_check_branch
      %2045 = sbr.rel (0) target = $region21
    $region20: #{tpu_custom_call.1} parent=1 // pred_region
      %2047 = vsyncadd [#allocation4], 0
      %s2048 = sshll.u32 [#allocation7], 4
      %s2049 = int_to_ptr.vmem [resolvable:$true] %s2048
      %s2050 = sshll.u32 %s2, 4
      %s2051 = int_to_ptr.hbm [resolvable:$true] %s2050
      %2056 = dma.vmem_to_hbm [thread:$0]  %s2049, 51200, %s2051, [#allocation4], 2048, 2048, 128
    $region21: #{tpu_custom_call.1} parent=1 // pred_fallthru
      _
    // Predicated region
    $region22: #{tpu_custom_call.1} parent=1 // pred_check
      _
    $region23: #{tpu_custom_call.1} parent=1 // pred_check_branch
      %2058 = sbr.rel (0) target = $region25
    $region24: #{tpu_custom_call.1} parent=1 // pred_region
      %2060 = dma.done [#allocation4], 51200
    $region25: #{tpu_custom_call.1} parent=1 // pred_fallthru
      _
    %2061 = vsyncpa [#allocation3], 1
    %2062 = vsyncpa [#allocation6], 1
    %2063 = vsyncpa [#allocation4], 1

</llo_original>
